<compile_context>
chip_gen: v6e
topology: v6e:2x2x1
jax: 0.10.0
libtpu: 0.0.40
codegen_flags: <defaults>
</compile_context>

<pallas_src>
import functools

import numpy as np
import jax
import jax.numpy as jnp
from jax.experimental import pallas as pl
from jax.experimental.pallas import tpu as pltpu


def _merge_ln_reduce_kernel(r00, r01, r10, r11, w_ref, aux_ref, o_ref, *, eps):
    """Fused 2x2x2 merge + LayerNorm + linear reduction.

    r<dd><dh>: (tb, th, W2, 2C) parity tiles (dw parity interleaved in last dim).
    w_ref:     (8C, Cout) bf16, LN gamma folded in, rows permuted to kernel order.
    aux_ref:   (2, Cout) f32; row 0 = column sums of w_ref, row 1 = beta @ W^T.
    o_ref:     (T, Cout) with T = tb*th*W2.
    """
    c2 = r00.shape[-1]                      # 2*C
    k = 4 * c2                              # 8*C = LayerNorm feature count
    n_tok = o_ref.shape[0]

    ssum = ssq = acc = None
    for idx, r in enumerate((r00, r01, r10, r11)):
        xb = r[...].reshape(n_tok, c2)                      # (T, 2C), input dtype
        xf = xb.astype(jnp.float32)                         # stats in fp32 (vreg only)
        s_b = jnp.sum(xf, axis=-1, keepdims=True)
        q_b = jnp.sum(xf * xf, axis=-1, keepdims=True)
        p_b = jnp.dot(xb.astype(jnp.bfloat16),
                      w_ref[pl.ds(idx * c2, c2), :],
                      preferred_element_type=jnp.float32)   # (T, Cout) f32 partial
        if idx == 0:
            ssum, ssq, acc = s_b, q_b, p_b
        else:
            ssum, ssq, acc = ssum + s_b, ssq + q_b, acc + p_b

    inv_k = 1.0 / float(k)
    mean = ssum * inv_k
    var = jnp.maximum(ssq * inv_k - mean * mean, 0.0)       # single-pass variance
    inv_std = jax.lax.rsqrt(var + eps)

    wcol = aux_ref[0:1, :]                                  # (1, Cout) colsum(W_fold)
    bias = aux_ref[1:2, :]                                  # (1, Cout) beta @ W^T
    y = (acc - mean * wcol) * inv_std + bias                # rank-1 mean correction
    o_ref[...] = y.astype(o_ref.dtype)


def _vmem_budget():
    # Never request the full physical VMEM (v7x only has 64 MiB per TensorCore);
    # leave headroom for Mosaic internal scratch.
    try:
        phys = int(pltpu.get_tpu_info().vmem_capacity_bytes)
    except Exception:
        phys = 64 * 1024 * 1024
    return max(32 * 1024 * 1024, (phys * 3) // 4)


def _vmem_estimate(tokens, C, Cout, in_isz, out_isz):
    in_b = 4 * tokens * 2 * C * in_isz * 2          # 4 parity tiles, double-buffered
    out_b = tokens * Cout * out_isz * 2             # output tile, double-buffered
    w_b = (8 * C * Cout * 2 + 2 * Cout * 4) * 2     # bf16 weight + f32 aux, 2 buffers
    scratch = tokens * (Cout + 2 * C) * 4           # f32 accumulator + transients
    return in_b + out_b + w_b + scratch + (2 << 20)


def _pick_div(n, unit, limit, max_div=None):
    """Largest divisor d of n with d*unit <= limit; prefer (d*unit) % 8 == 0."""
    best, best_aligned = 1, 0
    hi = n if max_div is None else max(1, min(n, max_div))
    for d in range(1, hi + 1):
        if n % d:
            continue
        if d * unit > limit:
            continue
        best = d
        if (d * unit) % 8 == 0:
            best_aligned = d
    if best_aligned and 2 * best_aligned >= best:
        return best_aligned
    return best


def _choose_tiles(BD2, H2, W2, target_tokens):
    """Return (tb, th): batch-slices and H2-rows per grid step."""
    if H2 * W2 >= target_tokens:
        # Tile along H2 only.  (If W2 alone exceeds the target the minimum tile
        # is one H2-row = W2 tokens; the VMEM estimate uses the actual size.)
        return 1, _pick_div(H2, W2, target_tokens)
    # Small spatial stage: take full H2 and fold several (b, d2) slices per step,
    # keeping >= 2 blocks on the leading grid axis for megacore balance.
    max_tb = max(1, BD2 // 2) if BD2 >= 2 else 1
    tb = _pick_div(BD2, H2 * W2, target_tokens, max_div=max_tb)
    return tb, H2


def patch_merging_3d(x, gamma, beta, weight, *, eps=1e-5, target_tokens=2048):
    """x: (B, D, H, W, C).  weight: (2C, 8C) torch nn.Linear layout (no bias).

    Returns (B, D//2, H//2, W//2, 2C), matching PatchMerging3D.forward.
    Pass x in bf16 to halve HBM traffic (LN stats are fp32 inside the kernel).
    """
    B, D, H, W, C = x.shape
    if (D % 2 == 1) or (H % 2 == 1) or (W % 2 == 1):
        # Reproduce reference F.pad(x, (0, D%2, 0, W%2, 0, H%2)) argument order:
        # it pads C by D%2, W by W%2, H by H%2.
        x = jnp.pad(x, ((0, 0), (0, 0), (0, H % 2), (0, W % 2), (0, D % 2)))
        B, D, H, W, C = x.shape
    assert D % 2 == 0, "reference PatchMerging3D cannot handle odd D (torch.cat fails)"

    D2, H2, W2 = D // 2, H // 2, W // 2
    K = 8 * C
    Cout = weight.shape[0]
    assert weight.shape == (Cout, K)
    BD2 = B * D2

    # Free reshape: (B*D2, 2[dd], H2, 2[dh], W2, 2C[=dw*C+c]).
    x6 = x.reshape(BD2, 2, H2, 2, W2, 2 * C)

    # ---- Tile selection + VMEM budget --------------------------------------
    in_isz = jnp.dtype(x.dtype).itemsize
    out_dtype = x.dtype
    out_isz = jnp.dtype(out_dtype).itemsize
    budget = _vmem_budget()
    target = int(target_tokens)
    while True:
        tb, th = _choose_tiles(BD2, H2, W2, target)
        tokens = tb * th * W2
        est = _vmem_estimate(tokens, C, Cout, in_isz, out_isz)
        if est <= budget or tokens <= W2:
            break
        target = max(W2, target // 2)
    nb, nh = BD2 // tb, H2 // th
    vmem_limit = int(min(budget, max(est + (4 << 20), 32 << 20)))

    # ---- Fold LN affine into the reduction weight, permute rows to kernel order.
    # Kernel feature order is [(dd,dh) in spec order] x [dw] x [c].
    spec_par = ((0, 0), (0, 1), (1, 0), (1, 1))                 # (dd, dh) per in_spec
    ref_block = {(0, 0, 0): 0, (1, 0, 0): 1, (0, 1, 0): 2, (0, 0, 1): 3,
                 (0, 1, 1): 4, (1, 0, 1): 5, (1, 1, 0): 6, (1, 1, 1): 7}
    perm = np.concatenate(
        [np.arange(C) + ref_block[(dd, dh, dw)] * C
         for (dd, dh) in spec_par for dw in (0, 1)])            # (8C,)

    wt = weight.T.astype(jnp.float32)                           # (8C_ref, Cout)
    w_fold = (gamma.astype(jnp.float32)[perm][:, None] * wt[perm, :]
              ).astype(jnp.bfloat16)                            # (8C_kernel, Cout) bf16
    wcol = jnp.sum(w_fold.astype(jnp.float32), axis=0, keepdims=True)  # (1, Cout) f32
    bias = (beta.astype(jnp.float32) @ wt).reshape(1, Cout)            # (1, Cout) f32
    aux = jnp.concatenate([wcol, bias], axis=0)                        # (2, Cout) f32

    def x_spec(dd, dh):
        return pl.BlockSpec(
            (tb, None, th, None, W2, 2 * C),
            lambda i, j, dd=dd, dh=dh: (i, dd, j, dh, 0, 0))

    out = pl.pallas_call(
        functools.partial(_merge_ln_reduce_kernel, eps=eps),
        out_shape=jax.ShapeDtypeStruct((nb, nh, tokens, Cout), out_dtype),
        grid_spec=pltpu.PrefetchScalarGridSpec(
            num_scalar_prefetch=0,
            grid=(nb, nh),
            in_specs=[x_spec(dd, dh) for (dd, dh) in spec_par] + [
                pl.BlockSpec((K, Cout), lambda i, j: (0, 0)),
                pl.BlockSpec((2, Cout), lambda i, j: (0, 0)),
            ],
            out_specs=pl.BlockSpec((None, None, tokens, Cout),
                                   lambda i, j: (i, j, 0, 0)),
        ),
        compiler_params=pltpu.CompilerParams(
            dimension_semantics=("parallel", "parallel"),
            vmem_limit_bytes=vmem_limit),
    )(x6, x6, x6, x6, w_fold, aux)

    return out.reshape(B, D2, H2, W2, Cout)


def _reference(x, gamma, beta, weight, eps=1e-5):
    x0 = x[:, 0::2, 0::2, 0::2, :]
    x1 = x[:, 1::2, 0::2, 0::2, :]
    x2 = x[:, 0::2, 1::2, 0::2, :]
    x3 = x[:, 0::2, 0::2, 1::2, :]
    x4 = x[:, 0::2, 1::2, 1::2, :]
    x5 = x[:, 1::2, 0::2, 1::2, :]
    x6 = x[:, 1::2, 1::2, 0::2, :]
    x7 = x[:, 1::2, 1::2, 1::2, :]
    xm = jnp.concatenate([x0, x1, x2, x3, x4, x5, x6, x7], axis=-1)
    mean = jnp.mean(xm, axis=-1, keepdims=True)
    var = jnp.mean((xm - mean) ** 2, axis=-1, keepdims=True)
    xn = (xm - mean) * jax.lax.rsqrt(var + eps) * gamma + beta
    return jnp.einsum("bdhwk,ok->bdhwo", xn, weight)


if __name__ == "__main__":
    key = jax.random.PRNGKey(0)
    k_x, k_w, k_g, k_b = jax.random.split(key, 4)

    dim = 64                      # input channels C (2C = Cout = 128 -> lane-dense)
    B, D, H, W = 2, 4, 16, 16     # even spatial dims (reference requires even D)

    x_f32 = jax.random.normal(k_x, (B, D, H, W, dim), dtype=jnp.float32)
    x = x_f32.astype(jnp.bfloat16)            # bf16 activations: half the HBM traffic
    # nn.Linear(8*dim, 2*dim, bias=False): weight shape (2*dim, 8*dim)
    weight = jax.random.normal(k_w, (2 * dim, 8 * dim), dtype=jnp.float32) * 0.02
    # nn.LayerNorm(8*dim) params (randomized so the gamma/beta folding is exercised)
    gamma = 1.0 + 0.1 * jax.random.normal(k_g, (8 * dim,), dtype=jnp.float32)
    beta = 0.1 * jax.random.normal(k_b, (8 * dim,), dtype=jnp.float32)

    out = patch_merging_3d(x, gamma, beta, weight)
    out = jax.block_until_ready(out)

    ref = _reference(x.astype(jnp.float32), gamma, beta, weight)
    assert out.shape == (B, D // 2, H // 2, W // 2, 2 * dim), out.shape
    out_f = out.astype(jnp.float32)
    max_err = float(jnp.max(jnp.abs(out_f - ref)))
    # bf16 activations/weights on the MXU (fp32 accumulation, fp32 LN stats) and a
    # bf16 output => relaxed tolerance vs the fp32 reference.
    assert jnp.allclose(out_f, ref, atol=3e-2, rtol=3e-2), f"mismatch (max abs err {max_err})"

    print("KERNEL_OK")
</pallas_src>

<mosaic_0001>
module attributes {stable_mosaic.version = 11 : i64} {
  func.func @_merge_ln_reduce_kernel(%arg0: i32, %arg1: i32, %arg2: memref<2x1x8x1x8x128xbf16, #tpu.memory_space<vmem>>, %arg3: memref<2x1x8x1x8x128xbf16, #tpu.memory_space<vmem>>, %arg4: memref<2x1x8x1x8x128xbf16, #tpu.memory_space<vmem>>, %arg5: memref<2x1x8x1x8x128xbf16, #tpu.memory_space<vmem>>, %arg6: memref<512x128xbf16, #tpu.memory_space<vmem>>, %arg7: memref<2x128xf32, #tpu.memory_space<vmem>>, %arg8: memref<1x1x128x128xbf16, #tpu.memory_space<vmem>>) attributes {dimension_semantics = [#tpu.dimension_semantics<parallel>, #tpu.dimension_semantics<parallel>], iteration_bounds = array<i64: 2, 1>, scalar_prefetch = 0 : i64, scratch_operands = 0 : i64, tpu.core_type = #tpu.core_type<tc>, window_params = [{transform_indices = @transform_0, window_bounds = array<i64: 2, 1, 8, 1, 8, 128>}, {transform_indices = @transform_1, window_bounds = array<i64: 2, 1, 8, 1, 8, 128>}, {transform_indices = @transform_2, window_bounds = array<i64: 2, 1, 8, 1, 8, 128>}, {transform_indices = @transform_3, window_bounds = array<i64: 2, 1, 8, 1, 8, 128>}, {pipeline_mode = #tpu.pipeline_mode<synchronous>, transform_indices = @transform_4, window_bounds = array<i64: 512, 128>}, {pipeline_mode = #tpu.pipeline_mode<synchronous>, transform_indices = @transform_5, window_bounds = array<i64: 2, 128>}, {transform_indices = @transform_6, window_bounds = array<i64: 1, 1, 128, 128>}]} {
    %c0 = arith.constant 0 : index
    %c0_0 = arith.constant 0 : index
    %c0_1 = arith.constant 0 : index
    %c0_2 = arith.constant 0 : index
    %c0_3 = arith.constant 0 : index
    %c0_4 = arith.constant 0 : index
    %0 = vector.load %arg2[%c0, %c0_0, %c0_1, %c0_2, %c0_3, %c0_4] : memref<2x1x8x1x8x128xbf16, #tpu.memory_space<vmem>>, vector<2x1x8x1x8x128xbf16>
    %1 = vector.shape_cast %0 : vector<2x1x8x1x8x128xbf16> to vector<2x8x8x128xbf16>
    %2 = vector.shape_cast %1 : vector<2x8x8x128xbf16> to vector<128x128xbf16>
    %3 = arith.extf %2 : vector<128x128xbf16> to vector<128x128xf32>
    %cst = arith.constant dense<0.000000e+00> : vector<128xf32>
    %4 = vector.multi_reduction <add>, %3, %cst [1] : vector<128x128xf32> to vector<128xf32>
    %5 = vector.shape_cast %4 : vector<128xf32> to vector<128x1xf32>
    %6 = arith.mulf %3, %3 : vector<128x128xf32>
    %cst_5 = arith.constant dense<0.000000e+00> : vector<128xf32>
    %7 = vector.multi_reduction <add>, %6, %cst_5 [1] : vector<128x128xf32> to vector<128xf32>
    %8 = vector.shape_cast %7 : vector<128xf32> to vector<128x1xf32>
    %c0_6 = arith.constant 0 : index
    %c0_7 = arith.constant 0 : index
    %9 = vector.load %arg6[%c0_6, %c0_7] : memref<512x128xbf16, #tpu.memory_space<vmem>>, vector<128x128xbf16>
    %cst_8 = arith.constant dense<0.000000e+00> : vector<128x128xf32>
    %10 = tpu.matmul %2, %9, %cst_8 {dimension_numbers = #tpu.dot_dimension_numbers<[1], [0], [0], [1], [0, 0, 1, 1], [], []>} : vector<128x128xbf16>, vector<128x128xbf16>, vector<128x128xf32> -> vector<128x128xf32>
    %c0_9 = arith.constant 0 : index
    %c0_10 = arith.constant 0 : index
    %c0_11 = arith.constant 0 : index
    %c0_12 = arith.constant 0 : index
    %c0_13 = arith.constant 0 : index
    %c0_14 = arith.constant 0 : index
    %11 = vector.load %arg3[%c0_9, %c0_10, %c0_11, %c0_12, %c0_13, %c0_14] : memref<2x1x8x1x8x128xbf16, #tpu.memory_space<vmem>>, vector<2x1x8x1x8x128xbf16>
    %12 = vector.shape_cast %11 : vector<2x1x8x1x8x128xbf16> to vector<2x8x8x128xbf16>
    %13 = vector.shape_cast %12 : vector<2x8x8x128xbf16> to vector<128x128xbf16>
    %14 = arith.extf %13 : vector<128x128xbf16> to vector<128x128xf32>
    %cst_15 = arith.constant dense<0.000000e+00> : vector<128xf32>
    %15 = vector.multi_reduction <add>, %14, %cst_15 [1] : vector<128x128xf32> to vector<128xf32>
    %16 = vector.shape_cast %15 : vector<128xf32> to vector<128x1xf32>
    %17 = arith.mulf %14, %14 : vector<128x128xf32>
    %cst_16 = arith.constant dense<0.000000e+00> : vector<128xf32>
    %18 = vector.multi_reduction <add>, %17, %cst_16 [1] : vector<128x128xf32> to vector<128xf32>
    %19 = vector.shape_cast %18 : vector<128xf32> to vector<128x1xf32>
    %c128 = arith.constant 128 : index
    %c0_17 = arith.constant 0 : index
    %20 = vector.load %arg6[%c128, %c0_17] : memref<512x128xbf16, #tpu.memory_space<vmem>>, vector<128x128xbf16>
    %cst_18 = arith.constant dense<0.000000e+00> : vector<128x128xf32>
    %21 = tpu.matmul %13, %20, %cst_18 {dimension_numbers = #tpu.dot_dimension_numbers<[1], [0], [0], [1], [0, 0, 1, 1], [], []>} : vector<128x128xbf16>, vector<128x128xbf16>, vector<128x128xf32> -> vector<128x128xf32>
    %22 = arith.addf %5, %16 : vector<128x1xf32>
    %23 = arith.addf %8, %19 : vector<128x1xf32>
    %24 = arith.addf %10, %21 : vector<128x128xf32>
    %c0_19 = arith.constant 0 : index
    %c0_20 = arith.constant 0 : index
    %c0_21 = arith.constant 0 : index
    %c0_22 = arith.constant 0 : index
    %c0_23 = arith.constant 0 : index
    %c0_24 = arith.constant 0 : index
    %25 = vector.load %arg4[%c0_19, %c0_20, %c0_21, %c0_22, %c0_23, %c0_24] : memref<2x1x8x1x8x128xbf16, #tpu.memory_space<vmem>>, vector<2x1x8x1x8x128xbf16>
    %26 = vector.shape_cast %25 : vector<2x1x8x1x8x128xbf16> to vector<2x8x8x128xbf16>
    %27 = vector.shape_cast %26 : vector<2x8x8x128xbf16> to vector<128x128xbf16>
    %28 = arith.extf %27 : vector<128x128xbf16> to vector<128x128xf32>
    %cst_25 = arith.constant dense<0.000000e+00> : vector<128xf32>
    %29 = vector.multi_reduction <add>, %28, %cst_25 [1] : vector<128x128xf32> to vector<128xf32>
    %30 = vector.shape_cast %29 : vector<128xf32> to vector<128x1xf32>
    %31 = arith.mulf %28, %28 : vector<128x128xf32>
    %cst_26 = arith.constant dense<0.000000e+00> : vector<128xf32>
    %32 = vector.multi_reduction <add>, %31, %cst_26 [1] : vector<128x128xf32> to vector<128xf32>
    %33 = vector.shape_cast %32 : vector<128xf32> to vector<128x1xf32>
    %c256 = arith.constant 256 : index
    %c0_27 = arith.constant 0 : index
    %34 = vector.load %arg6[%c256, %c0_27] : memref<512x128xbf16, #tpu.memory_space<vmem>>, vector<128x128xbf16>
    %cst_28 = arith.constant dense<0.000000e+00> : vector<128x128xf32>
    %35 = tpu.matmul %27, %34, %cst_28 {dimension_numbers = #tpu.dot_dimension_numbers<[1], [0], [0], [1], [0, 0, 1, 1], [], []>} : vector<128x128xbf16>, vector<128x128xbf16>, vector<128x128xf32> -> vector<128x128xf32>
    %36 = arith.addf %22, %30 : vector<128x1xf32>
    %37 = arith.addf %23, %33 : vector<128x1xf32>
    %38 = arith.addf %24, %35 : vector<128x128xf32>
    %c0_29 = arith.constant 0 : index
    %c0_30 = arith.constant 0 : index
    %c0_31 = arith.constant 0 : index
    %c0_32 = arith.constant 0 : index
    %c0_33 = arith.constant 0 : index
    %c0_34 = arith.constant 0 : index
    %39 = vector.load %arg5[%c0_29, %c0_30, %c0_31, %c0_32, %c0_33, %c0_34] : memref<2x1x8x1x8x128xbf16, #tpu.memory_space<vmem>>, vector<2x1x8x1x8x128xbf16>
    %40 = vector.shape_cast %39 : vector<2x1x8x1x8x128xbf16> to vector<2x8x8x128xbf16>
    %41 = vector.shape_cast %40 : vector<2x8x8x128xbf16> to vector<128x128xbf16>
    %42 = arith.extf %41 : vector<128x128xbf16> to vector<128x128xf32>
    %cst_35 = arith.constant dense<0.000000e+00> : vector<128xf32>
    %43 = vector.multi_reduction <add>, %42, %cst_35 [1] : vector<128x128xf32> to vector<128xf32>
    %44 = vector.shape_cast %43 : vector<128xf32> to vector<128x1xf32>
    %45 = arith.mulf %42, %42 : vector<128x128xf32>
    %cst_36 = arith.constant dense<0.000000e+00> : vector<128xf32>
    %46 = vector.multi_reduction <add>, %45, %cst_36 [1] : vector<128x128xf32> to vector<128xf32>
    %47 = vector.shape_cast %46 : vector<128xf32> to vector<128x1xf32>
    %c384 = arith.constant 384 : index
    %c0_37 = arith.constant 0 : index
    %48 = vector.load %arg6[%c384, %c0_37] : memref<512x128xbf16, #tpu.memory_space<vmem>>, vector<128x128xbf16>
    %cst_38 = arith.constant dense<0.000000e+00> : vector<128x128xf32>
    %49 = tpu.matmul %41, %48, %cst_38 {dimension_numbers = #tpu.dot_dimension_numbers<[1], [0], [0], [1], [0, 0, 1, 1], [], []>} : vector<128x128xbf16>, vector<128x128xbf16>, vector<128x128xf32> -> vector<128x128xf32>
    %50 = arith.addf %36, %44 : vector<128x1xf32>
    %51 = arith.addf %37, %47 : vector<128x1xf32>
    %52 = arith.addf %38, %49 : vector<128x128xf32>
    %cst_39 = arith.constant 0.001953125 : f32
    %53 = vector.broadcast %cst_39 : f32 to vector<128x1xf32>
    %54 = arith.mulf %50, %53 : vector<128x1xf32>
    %cst_40 = arith.constant 0.001953125 : f32
    %55 = vector.broadcast %cst_40 : f32 to vector<128x1xf32>
    %56 = arith.mulf %51, %55 : vector<128x1xf32>
    %57 = arith.mulf %54, %54 : vector<128x1xf32>
    %58 = arith.subf %56, %57 : vector<128x1xf32>
    %cst_41 = arith.constant 0.000000e+00 : f32
    %59 = vector.broadcast %cst_41 : f32 to vector<128x1xf32>
    %60 = arith.maximumf %58, %59 : vector<128x1xf32>
    %cst_42 = arith.constant 9.99999974E-6 : f32
    %61 = vector.broadcast %cst_42 : f32 to vector<128x1xf32>
    %62 = arith.addf %60, %61 : vector<128x1xf32>
    %63 = math.rsqrt %62 : vector<128x1xf32>
    %c0_43 = arith.constant 0 : index
    %c0_44 = arith.constant 0 : index
    %64 = vector.load %arg7[%c0_43, %c0_44] : memref<2x128xf32, #tpu.memory_space<vmem>>, vector<1x128xf32>
    %c1 = arith.constant 1 : index
    %c0_45 = arith.constant 0 : index
    %65 = vector.load %arg7[%c1, %c0_45] : memref<2x128xf32, #tpu.memory_space<vmem>>, vector<1x128xf32>
    %66 = vector.broadcast %54 : vector<128x1xf32> to vector<128x128xf32>
    %67 = vector.broadcast %64 : vector<1x128xf32> to vector<128x128xf32>
    %68 = arith.mulf %66, %67 : vector<128x128xf32>
    %69 = arith.subf %52, %68 : vector<128x128xf32>
    %70 = vector.broadcast %63 : vector<128x1xf32> to vector<128x128xf32>
    %71 = arith.mulf %69, %70 : vector<128x128xf32>
    %72 = vector.broadcast %65 : vector<1x128xf32> to vector<128x128xf32>
    %73 = arith.addf %71, %72 : vector<128x128xf32>
    %74 = arith.truncf %73 : vector<128x128xf32> to vector<128x128xbf16>
    %c0_46 = arith.constant 0 : index
    %c0_47 = arith.constant 0 : index
    %c0_48 = arith.constant 0 : index
    %c0_49 = arith.constant 0 : index
    %75 = vector.load %arg8[%c0_46, %c0_47, %c0_48, %c0_49] : memref<1x1x128x128xbf16, #tpu.memory_space<vmem>>, vector<1x1x128x128xbf16>
    %76 = vector.shape_cast %75 : vector<1x1x128x128xbf16> to vector<128x128xbf16>
    %77 = vector.shape_cast %74 : vector<128x128xbf16> to vector<1x1x128x128xbf16>
    tpu.vector_store %arg8[%c0_46, %c0_47, %c0_48, %c0_49], %77 {strides = array<i32>} : memref<1x1x128x128xbf16, #tpu.memory_space<vmem>>, vector<1x1x128x128xbf16>,
    return
  }
  func.func @transform_0(%arg0: i32, %arg1: i32) -> (i32, i32, i32, i32, i32, i32) {
    %c0_i32 = arith.constant 0 : i32
    %c0_i32_0 = arith.constant 0 : i32
    %c0_i32_1 = arith.constant 0 : i32
    %c0_i32_2 = arith.constant 0 : i32
    %c0_i32_3 = arith.constant 0 : i32
    return %arg0, %c0_i32, %arg1, %c0_i32_0, %c0_i32_1, %c0_i32_2 : i32, i32, i32, i32, i32, i32
  }
  func.func @transform_1(%arg0: i32, %arg1: i32) -> (i32, i32, i32, i32, i32, i32) {
    %c0_i32 = arith.constant 0 : i32
    %c1_i32 = arith.constant 1 : i32
    %c0_i32_0 = arith.constant 0 : i32
    %c0_i32_1 = arith.constant 0 : i32
    %c0_i32_2 = arith.constant 0 : i32
    return %arg0, %c0_i32, %arg1, %c1_i32, %c0_i32_0, %c0_i32_1 : i32, i32, i32, i32, i32, i32
  }
  func.func @transform_2(%arg0: i32, %arg1: i32) -> (i32, i32, i32, i32, i32, i32) {
    %c1_i32 = arith.constant 1 : i32
    %c0_i32 = arith.constant 0 : i32
    %c0_i32_0 = arith.constant 0 : i32
    %c0_i32_1 = arith.constant 0 : i32
    %c0_i32_2 = arith.constant 0 : i32
    return %arg0, %c1_i32, %arg1, %c0_i32, %c0_i32_0, %c0_i32_1 : i32, i32, i32, i32, i32, i32
  }
  func.func @transform_3(%arg0: i32, %arg1: i32) -> (i32, i32, i32, i32, i32, i32) {
    %c1_i32 = arith.constant 1 : i32
    %c1_i32_0 = arith.constant 1 : i32
    %c0_i32 = arith.constant 0 : i32
    %c0_i32_1 = arith.constant 0 : i32
    %c0_i32_2 = arith.constant 0 : i32
    return %arg0, %c1_i32, %arg1, %c1_i32_0, %c0_i32, %c0_i32_1 : i32, i32, i32, i32, i32, i32
  }
  func.func @transform_4(%arg0: i32, %arg1: i32) -> (i32, i32) {
    %c0_i32 = arith.constant 0 : i32
    %c0_i32_0 = arith.constant 0 : i32
    %c0_i32_1 = arith.constant 0 : i32
    return %c0_i32, %c0_i32_0 : i32, i32
  }
  func.func @transform_5(%arg0: i32, %arg1: i32) -> (i32, i32) {
    %c0_i32 = arith.constant 0 : i32
    %c0_i32_0 = arith.constant 0 : i32
    %c0_i32_1 = arith.constant 0 : i32
    return %c0_i32, %c0_i32_0 : i32, i32
  }
  func.func @transform_6(%arg0: i32, %arg1: i32) -> (i32, i32, i32, i32) {
    %c0_i32 = arith.constant 0 : i32
    %c0_i32_0 = arith.constant 0 : i32
    %c0_i32_1 = arith.constant 0 : i32
    return %arg0, %arg1, %c0_i32, %c0_i32_0 : i32, i32, i32, i32
  }
}

</mosaic_0001>

<llo_original>
// kernel: tpu_custom_call.1
$region0: #{tpu_custom_call.1}
  #allocation0 [shape = 'u32[]', space=smem, size = 0x4, offset = 0x4, fixed_abs, tag = 'smem constant byte address 0x4 - core index']
  #allocation1 [shape = 'u32[144,128]{1,0:T(1,128)}', space=vmem, size = 0x12000, scoped, tag = 'internal scratch']
  #allocation12 [shape = 's32[]', space=sflag, size = 0x4, offset = 0, fixed_abs, tag = 'sflag constant byte address 0x0 - dummy sync flag']
  #allocation14 [shape = 's32[]', space=sflag, size = 0x4, offset = 0, fixed_abs, tag = 'sflag constant byte address 0x0 - dummy sync flag']
  #allocation16 [shape = 's32[]', space=sflag, size = 0x4, offset = 0, fixed_abs, tag = 'sflag constant byte address 0x0 - dummy sync flag']
  #allocation18 [shape = 's32[]', space=sflag, size = 0x4, offset = 0, fixed_abs, tag = 'sflag constant byte address 0x0 - dummy sync flag']
  %s0 = inlined_call_operand.hbm [shape: bf16[4,2,8,2,8,128], index: 0, kind: input, shape index: {}]
  %s1 = inlined_call_operand.hbm [shape: bf16[4,2,8,2,8,128], index: 1, kind: input, shape index: {}]
  %s2 = inlined_call_operand.hbm [shape: bf16[4,2,8,2,8,128], index: 2, kind: input, shape index: {}]
  %s3 = inlined_call_operand.hbm [shape: bf16[4,2,8,2,8,128], index: 3, kind: input, shape index: {}]
  %s4 = inlined_call_operand.hbm [shape: bf16[512,128], index: 4, kind: input, shape index: {}]
  %s5 = inlined_call_operand.vmem [shape: f32[2,128], index: 5, kind: input, shape index: {}]
  %s6 = inlined_call_operand.hbm [shape: bf16[2,1,128,128], index: 6, kind: output, shape index: {}]
  %s7 = sld [smem:[#allocation0]]
  $region77: #{tpu_custom_call.1} parent=0
    _
  %s9 = ssub.s32 1, %s7
  %s10 = scalar_select 0, %s9, %s7
  $region1: #{tpu_custom_call.1} parent=0
    #allocation2 [shape = 'u8[65536]{0}', space=vmem, size = 0x10000, scoped, tag = 'input window, operand 0']
    #allocation3 [shape = 's32[2]{0}', space=sflag, size = 0x8, scoped, tag = 'scoped memory for tpu_custom_call.1']
    #allocation4 [shape = 's32[2]{0}', space=sflag, size = 0x8, scoped, tag = 'scoped memory for tpu_custom_call.1']
    #allocation5 [shape = 'u8[65536]{0}', space=vmem, size = 0x10000, scoped, tag = 'input window, operand 1']
    #allocation6 [shape = 's32[2]{0}', space=sflag, size = 0x8, scoped, tag = 'scoped memory for tpu_custom_call.1']
    #allocation7 [shape = 'u8[65536]{0}', space=vmem, size = 0x10000, scoped, tag = 'input window, operand 2']
    #allocation8 [shape = 'u8[65536]{0}', space=vmem, size = 0x10000, scoped, tag = 'input window, operand 3']
    #allocation9 [shape = 's32[2]{0}', space=sflag, size = 0x8, scoped, tag = 'scoped memory for tpu_custom_call.1']
    #allocation10 [shape = 'u8[131072]{0}', space=vmem, size = 0x20000, scoped, tag = 'input window, operand 4, single buffered']
    #allocation11 [shape = 'u8[65536]{0}', space=vmem, size = 0x10000, scoped, tag = 'output window, operand 0']
    %11 = vsyncpa [#allocation3], 0
    %s12 = scalar_lea.sflag [#allocation3], 1
    %13 = vsyncpa %s12, 0
    %14 = vsyncpa [#allocation6], 0
    %s15 = scalar_lea.sflag [#allocation6], 1
    %16 = vsyncpa %s15, 0
    %17 = vsyncpa [#allocation9], 0
    %s18 = scalar_lea.sflag [#allocation9], 1
    %19 = vsyncpa %s18, 0
    %20 = vsyncpa [#allocation4], 0
    %s21 = scalar_lea.sflag [#allocation4], 1
    %22 = vsyncpa %s21, 0
    loop: start=0, step=1, limit=4
    $region2: #{tpu_custom_call.1} parent=1 // loop_pre_header
      _
    $region3: #{tpu_custom_call.1} parent=1 // loop_header
      %s24 = sphi 0, %s28
      %p25 = scmp.ge.s32.totalorder %s24, 4
      %s31 = sphi 0, %s43
      %s32 = sphi 0, %s39
      %s33 = sphi 0, %s31
      %s34 = sphi 0, %s32
      %s35 = sphi 0, %s33
      %s36 = sphi 0, %s34
      %s48 = sphi 0, %s50
      %s51 = sphi 0, %s48
      %s52 = sphi 0, %s51
      %s68 = sphi 0, %s52
      %s76 = sphi 0, %s78
      %s79 = sphi 0, %s76
      %s80 = sphi 0, %s79
      %s96 = sphi 0, %s80
      %s104 = sphi 0, %s106
      %s107 = sphi 0, %s104
      %s108 = sphi 0, %s107
      %s124 = sphi 0, %s108
      %s132 = sphi 0, %s134
      %s135 = sphi 0, %s132
      %s136 = sphi 0, %s135
      %s152 = sphi 0, %s136
      %s156 = sphi 0, %s156
      %s158 = sphi 0, %s156
      %s159 = sphi 0, %s158
      %s173 = sphi 0, %s159
      %s177 = sphi 0, %s177
      %s179 = sphi 0, %s177
      %s180 = sphi 0, %s179
      %s194 = sphi 0, %s180
      %s202 = sphi 0, %s204
      %s205 = sphi 0, %s202
      %s206 = sphi 0, %s205
      %s222 = sphi 0, %s206
    $region4: #{tpu_custom_call.1} parent=1 // loop_header_branch
      %27 = sbr.rel (%p25) target = $region8
    $region5: #{tpu_custom_call.1} parent=1 // loop_body
      %s29 = ssub.s32 %s24, 1
      %s30 = ssub.s32 %s24, 2
      %s37 = sadd.s32 1, %s32
      %p38 = scmp.ge.s32.totalorder %s37, 1
      %s39 = scalar_select %p38, 0, %s37
      %s40 = sadd.s32 1, %s31
      %s41 = scalar_select %p38, %s40, %s31
      %p42 = scmp.ge.s32.totalorder %s41, 2
      %s43 = scalar_select %p42, 0, %s41
      %s44 = ssub.s32 %s31, %s43
      %s45 = ssub.s32 %s32, %s39
      %s46 = sor.u32 %s44, %s45
      %p47 = scmp.eq.s32.totalorder %s46, 0
      %s49 = sadd.s32 %s48, 1
      %s50 = scalar_select %p47, %s48, %s49
      %p53 = pneg %p47
      %p54 = scmp.eq.s32.totalorder %s24, 1
      %p55 = por %p53, %p54
      %p56 = scmp.ne.s32.totalorder %s48, %s51
      %p57 = scmp.eq.s32.totalorder %s24, 0
      %p58 = por %p56, %p57
      %p59 = scmp.ne.s32.totalorder %s48, %s51
      %p60 = scmp.eq.s32.totalorder %s29, 1
      %p61 = por %p59, %p60
      %p62 = scmp.ne.s32.totalorder %s51, %s52
      %p63 = scmp.eq.s32.totalorder %s29, 0
      %p64 = por %p62, %p63
      %p65 = scmp.ne.s32.totalorder %s51, %s52
      %p66 = scmp.eq.s32.totalorder %s30, 1
      %p67 = por %p65, %p66
      %p69 = scmp.ne.s32.totalorder %s52, %s68
      %p70 = scmp.eq.s32.totalorder %s30, 0
      %p71 = por %p69, %p70
      %s72 = ssub.s32 %s31, %s43
      %s73 = ssub.s32 %s32, %s39
      %s74 = sor.u32 %s72, %s73
      %p75 = scmp.eq.s32.totalorder %s74, 0
      %s77 = sadd.s32 %s76, 1
      %s78 = scalar_select %p75, %s76, %s77
      %p81 = pneg %p75
      %p82 = scmp.eq.s32.totalorder %s24, 1
      %p83 = por %p81, %p82
      %p84 = scmp.ne.s32.totalorder %s76, %s79
      %p85 = scmp.eq.s32.totalorder %s24, 0
      %p86 = por %p84, %p85
      %p87 = scmp.ne.s32.totalorder %s76, %s79
      %p88 = scmp.eq.s32.totalorder %s29, 1
      %p89 = por %p87, %p88
      %p90 = scmp.ne.s32.totalorder %s79, %s80
      %p91 = scmp.eq.s32.totalorder %s29, 0
      %p92 = por %p90, %p91
      %p93 = scmp.ne.s32.totalorder %s79, %s80
      %p94 = scmp.eq.s32.totalorder %s30, 1
      %p95 = por %p93, %p94
      %p97 = scmp.ne.s32.totalorder %s80, %s96
      %p98 = scmp.eq.s32.totalorder %s30, 0
      %p99 = por %p97, %p98
      %s100 = ssub.s32 %s31, %s43
      %s101 = ssub.s32 %s32, %s39
      %s102 = sor.u32 %s100, %s101
      %p103 = scmp.eq.s32.totalorder %s102, 0
      %s105 = sadd.s32 %s104, 1
      %s106 = scalar_select %p103, %s104, %s105
      %p109 = pneg %p103
      %p110 = scmp.eq.s32.totalorder %s24, 1
      %p111 = por %p109, %p110
      %p112 = scmp.ne.s32.totalorder %s104, %s107
      %p113 = scmp.eq.s32.totalorder %s24, 0
      %p114 = por %p112, %p113
      %p115 = scmp.ne.s32.totalorder %s104, %s107
      %p116 = scmp.eq.s32.totalorder %s29, 1
      %p117 = por %p115, %p116
      %p118 = scmp.ne.s32.totalorder %s107, %s108
      %p119 = scmp.eq.s32.totalorder %s29, 0
      %p120 = por %p118, %p119
      %p121 = scmp.ne.s32.totalorder %s107, %s108
      %p122 = scmp.eq.s32.totalorder %s30, 1
      %p123 = por %p121, %p122
      %p125 = scmp.ne.s32.totalorder %s108, %s124
      %p126 = scmp.eq.s32.totalorder %s30, 0
      %p127 = por %p125, %p126
      %s128 = ssub.s32 %s31, %s43
      %s129 = ssub.s32 %s32, %s39
      %s130 = sor.u32 %s128, %s129
      %p131 = scmp.eq.s32.totalorder %s130, 0
      %s133 = sadd.s32 %s132, 1
      %s134 = scalar_select %p131, %s132, %s133
      %p137 = pneg %p131
      %p138 = scmp.eq.s32.totalorder %s24, 1
      %p139 = por %p137, %p138
      %p140 = scmp.ne.s32.totalorder %s132, %s135
      %p141 = scmp.eq.s32.totalorder %s24, 0
      %p142 = por %p140, %p141
      %p143 = scmp.ne.s32.totalorder %s132, %s135
      %p144 = scmp.eq.s32.totalorder %s29, 1
      %p145 = por %p143, %p144
      %p146 = scmp.ne.s32.totalorder %s135, %s136
      %p147 = scmp.eq.s32.totalorder %s29, 0
      %p148 = por %p146, %p147
      %p149 = scmp.ne.s32.totalorder %s135, %s136
      %p150 = scmp.eq.s32.totalorder %s30, 1
      %p151 = por %p149, %p150
      %p153 = scmp.ne.s32.totalorder %s136, %s152
      %p154 = scmp.eq.s32.totalorder %s30, 0
      %p155 = por %p153, %p154
      %s157 = sadd.s32 %s156, 1
      %p160 = scmp.eq.s32.totalorder %s24, 1
      %p161 = scmp.ne.s32.totalorder %s156, %s158
      %p162 = scmp.eq.s32.totalorder %s24, 0
      %p163 = por %p161, %p162
      %p164 = scmp.ne.s32.totalorder %s156, %s158
      %p165 = scmp.eq.s32.totalorder %s29, 1
      %p166 = por %p164, %p165
      %p167 = scmp.ne.s32.totalorder %s158, %s159
      %p168 = scmp.eq.s32.totalorder %s29, 0
      %p169 = por %p167, %p168
      %p170 = scmp.ne.s32.totalorder %s158, %s159
      %p171 = scmp.eq.s32.totalorder %s30, 1
      %p172 = por %p170, %p171
      %p174 = scmp.ne.s32.totalorder %s159, %s173
      %p175 = scmp.eq.s32.totalorder %s30, 0
      %p176 = por %p174, %p175
      %s178 = sadd.s32 %s177, 1
      %p181 = scmp.eq.s32.totalorder %s24, 1
      %p182 = scmp.ne.s32.totalorder %s177, %s179
      %p183 = scmp.eq.s32.totalorder %s24, 0
      %p184 = por %p182, %p183
      %p185 = scmp.ne.s32.totalorder %s177, %s179
      %p186 = scmp.eq.s32.totalorder %s29, 1
      %p187 = por %p185, %p186
      %p188 = scmp.ne.s32.totalorder %s179, %s180
      %p189 = scmp.eq.s32.totalorder %s29, 0
      %p190 = por %p188, %p189
      %p191 = scmp.ne.s32.totalorder %s179, %s180
      %p192 = scmp.eq.s32.totalorder %s30, 1
      %p193 = por %p191, %p192
      %p195 = scmp.ne.s32.totalorder %s180, %s194
      %p196 = scmp.eq.s32.totalorder %s30, 0
      %p197 = por %p195, %p196
      %s198 = ssub.s32 %s31, %s43
      %s199 = ssub.s32 %s32, %s39
      %s200 = sor.u32 %s198, %s199
      %p201 = scmp.eq.s32.totalorder %s200, 0
      %s203 = sadd.s32 %s202, 1
      %s204 = scalar_select %p201, %s202, %s203
      %p207 = pneg %p201
      %p208 = scmp.eq.s32.totalorder %s24, 1
      %p209 = por %p207, %p208
      %p210 = scmp.ne.s32.totalorder %s202, %s205
      %p211 = scmp.eq.s32.totalorder %s24, 0
      %p212 = por %p210, %p211
      %p213 = scmp.ne.s32.totalorder %s202, %s205
      %p214 = scmp.eq.s32.totalorder %s29, 1
      %p215 = por %p213, %p214
      %p216 = scmp.ne.s32.totalorder %s205, %s206
      %p217 = scmp.eq.s32.totalorder %s29, 0
      %p218 = por %p216, %p217
      %p219 = scmp.ne.s32.totalorder %s205, %s206
      %p220 = scmp.eq.s32.totalorder %s30, 1
      %p221 = por %p219, %p220
      %p223 = scmp.ne.s32.totalorder %s206, %s222
      %p224 = scmp.eq.s32.totalorder %s30, 0
      %p225 = por %p223, %p224
      %p226 = scmp.le.s32.totalorder 1, %s24
      %p227 = scmp.lt.s32.totalorder %s24, 3
      %p228 = pnand %p226, %p227
      %p229 = pneg %p228
      // Predicated region
      $region9: #{tpu_custom_call.1} parent=5 // pred_check
        _
      $region10: #{tpu_custom_call.1} parent=5 // pred_check_branch
        %231 = sbr.rel (%p228) target = $region12
      $region11: #{tpu_custom_call.1} parent=5 // pred_region
        %s232 = ssub.s32 %s24, 1
        // Predicated region
        $region13: #{tpu_custom_call.1} parent=11 // pred_check
          %p233 = pneg %p169
        $region14: #{tpu_custom_call.1} parent=11 // pred_check_branch
          %235 = sbr.rel (%p233) target = $region16
        $region15: #{tpu_custom_call.1} parent=11 // pred_region
          %s237 = ssub.s32 4096, 4096
          %238 = vsyncadd [#allocation9], %s237
          %s239 = sshll.u32 [#allocation10], 4
          %s240 = int_to_ptr.vmem [resolvable:$true] %s239
          %245 = dma.hbm_to_vmem [thread:$0]  %s4, 4096, %s240, [#allocation9], 64, 64, 4
        $region16: #{tpu_custom_call.1} parent=11 // pred_fallthru
          _
        // Predicated region
        $region17: #{tpu_custom_call.1} parent=11 // pred_check
          %p246 = pneg %p190
        $region18: #{tpu_custom_call.1} parent=11 // pred_check_branch
          %248 = sbr.rel (%p246) target = $region20
        $region19: #{tpu_custom_call.1} parent=11 // pred_region
          _
        $region20: #{tpu_custom_call.1} parent=11 // pred_fallthru
          _
      $region12: #{tpu_custom_call.1} parent=5 // pred_fallthru
        _
      %p249 = scmp.lt.s32.totalorder %s24, 2
      // Predicated region
      $region21: #{tpu_custom_call.1} parent=5 // pred_check
        %p250 = pneg %p249
      $region22: #{tpu_custom_call.1} parent=5 // pred_check_branch
        %252 = sbr.rel (%p250) target = $region24
      $region23: #{tpu_custom_call.1} parent=5 // pred_region
        // Predicated region
        $region25: #{tpu_custom_call.1} parent=23 // pred_check
          %p253 = pneg %p58
        $region26: #{tpu_custom_call.1} parent=23 // pred_check_branch
          %255 = sbr.rel (%p253) target = $region28
        $region27: #{tpu_custom_call.1} parent=23 // pred_region
          #allocation13 [shape = 'u32[6]{0}', space=smem, size = 0x18, scoped, tag = 'DMA stride descriptor']
          %s256 = sand.u32 %s48, 1
          %s257 = scalar_lea.sflag [#allocation3], %s256
          %s258 = sand.u32 %s48, 1
          %s259 = smul.addr %s258, 64
          %s260 = scalar_lea.vmem [#allocation2], %s259
          %s261 = smul.u32 2, %s31
          %s262 = smul.u32 8, %s32
          %s264 = ssub.s32 1024, 1024
          %265 = vsyncadd %s257, %s264
          %s266 = smul.addr %s262, 2
          %s267 = smul.addr %s261, 32
          %s268 = sadd.s32 %s266, %s267
          %s269 = smul.addr %s268, 64
          %s270 = scalar_lea.hbm %s0, %s269
          %s272 = sshll.u32 1, 14
          %s273 = sxor.u32 4294967295, %s272
          %s275 = sld [smem:[#allocation0]]
          %s276 = sadd.s32 2, %s275
          %s278 = sshll.u32 7, 26
          %s279 = sxor.u32 4294967295, %s278
          %s280 = sand.u32 0, %s279
          %s281 = sshll.u32 %s276, 26
          %s282 = sor.u32 %s280, %s281
          %s283 = sshll.u32 %s260, 4
          %s284 = int_to_ptr.vmem [resolvable:$true] %s283
          %290 = sst [smem:[#allocation13]] 2048
          %s291 = scalar_lea.smem [#allocation13], 1
          %292 = sst [smem:[%s291]] 512
          %s293 = scalar_lea.smem [#allocation13], 2
          %294 = sst [smem:[%s293]] 8
          %s295 = scalar_lea.smem [#allocation13], 3
          %296 = sst [smem:[%s295]] 128
          %s297 = scalar_lea.smem [#allocation13], 4
          %298 = sst [smem:[%s297]] 64
          %s299 = scalar_lea.smem [#allocation13], 5
          %300 = sst [smem:[%s299]] 4
          %302 = dma.general %s270, 1024, %s284, %s257, 131072, [#allocation13], %s282, 0
        $region28: #{tpu_custom_call.1} parent=23 // pred_fallthru
          _
        // Predicated region
        $region29: #{tpu_custom_call.1} parent=23 // pred_check
          %p303 = pneg %p86
        $region30: #{tpu_custom_call.1} parent=23 // pred_check_branch
          %305 = sbr.rel (%p303) target = $region32
        $region31: #{tpu_custom_call.1} parent=23 // pred_region
          #allocation15 [shape = 'u32[6]{0}', space=smem, size = 0x18, scoped, tag = 'DMA stride descriptor']
          %s306 = sand.u32 %s24, 1
          %s307 = scalar_lea.sflag [#allocation6], %s306
          %s308 = sand.u32 %s76, 1
          %s309 = smul.addr %s308, 64
          %s310 = scalar_lea.vmem [#allocation5], %s309
          %s311 = smul.u32 2, %s31
          %s312 = smul.u32 8, %s32
          %s314 = ssub.s32 1024, 1024
          %315 = vsyncadd %s307, %s314
          %s316 = smul.addr %s312, 2
          %s317 = sadd.s32 1, %s316
          %s318 = smul.addr %s311, 32
          %s319 = sadd.s32 %s317, %s318
          %s320 = smul.addr %s319, 64
          %s321 = scalar_lea.hbm %s1, %s320
          %s323 = sshll.u32 1, 14
          %s324 = sxor.u32 4294967295, %s323
          %s326 = sld [smem:[#allocation0]]
          %s327 = sadd.s32 2, %s326
          %s329 = sshll.u32 7, 26
          %s330 = sxor.u32 4294967295, %s329
          %s331 = sand.u32 0, %s330
          %s332 = sshll.u32 %s327, 26
          %s333 = sor.u32 %s331, %s332
          %s334 = sshll.u32 %s310, 4
          %s335 = int_to_ptr.vmem [resolvable:$true] %s334
          %341 = sst [smem:[#allocation15]] 2048
          %s342 = scalar_lea.smem [#allocation15], 1
          %343 = sst [smem:[%s342]] 512
          %s344 = scalar_lea.smem [#allocation15], 2
          %345 = sst [smem:[%s344]] 8
          %s346 = scalar_lea.smem [#allocation15], 3
          %347 = sst [smem:[%s346]] 128
          %s348 = scalar_lea.smem [#allocation15], 4
          %349 = sst [smem:[%s348]] 64
          %s350 = scalar_lea.smem [#allocation15], 5
          %351 = sst [smem:[%s350]] 4
          %353 = dma.general %s321, 1024, %s335, %s307, 131072, [#allocation15], %s333, 0
        $region32: #{tpu_custom_call.1} parent=23 // pred_fallthru
          _
        // Predicated region
        $region33: #{tpu_custom_call.1} parent=23 // pred_check
          %p354 = pneg %p114
        $region34: #{tpu_custom_call.1} parent=23 // pred_check_branch
          %356 = sbr.rel (%p354) target = $region36
        $region35: #{tpu_custom_call.1} parent=23 // pred_region
          #allocation17 [shape = 'u32[6]{0}', space=smem, size = 0x18, scoped, tag = 'DMA stride descriptor']
          %s357 = sand.u32 %s24, 1
          %s358 = scalar_lea.sflag [#allocation6], %s357
          %s359 = sand.u32 %s104, 1
          %s360 = smul.addr %s359, 64
          %s361 = scalar_lea.vmem [#allocation7], %s360
          %s362 = smul.u32 2, %s31
          %s363 = smul.u32 8, %s32
          %s365 = ssub.s32 1024, 1024
          %366 = vsyncadd %s358, %s365
          %s367 = smul.addr %s363, 2
          %s368 = sadd.s32 %s367, 16
          %s369 = smul.addr %s362, 32
          %s370 = sadd.s32 %s368, %s369
          %s371 = smul.addr %s370, 64
          %s372 = scalar_lea.hbm %s2, %s371
          %s374 = sshll.u32 1, 14
          %s375 = sxor.u32 4294967295, %s374
          %s377 = sld [smem:[#allocation0]]
          %s378 = sadd.s32 2, %s377
          %s380 = sshll.u32 7, 26
          %s381 = sxor.u32 4294967295, %s380
          %s382 = sand.u32 0, %s381
          %s383 = sshll.u32 %s378, 26
          %s384 = sor.u32 %s382, %s383
          %s385 = sshll.u32 %s361, 4
          %s386 = int_to_ptr.vmem [resolvable:$true] %s385
          %392 = sst [smem:[#allocation17]] 2048
          %s393 = scalar_lea.smem [#allocation17], 1
          %394 = sst [smem:[%s393]] 512
          %s395 = scalar_lea.smem [#allocation17], 2
          %396 = sst [smem:[%s395]] 8
          %s397 = scalar_lea.smem [#allocation17], 3
          %398 = sst [smem:[%s397]] 128
          %s399 = scalar_lea.smem [#allocation17], 4
          %400 = sst [smem:[%s399]] 64
          %s401 = scalar_lea.smem [#allocation17], 5
          %402 = sst [smem:[%s401]] 4
          %404 = dma.general %s372, 1024, %s386, %s358, 131072, [#allocation17], %s384, 0
        $region36: #{tpu_custom_call.1} parent=23 // pred_fallthru
          _
        // Predicated region
        $region37: #{tpu_custom_call.1} parent=23 // pred_check
          %p405 = pneg %p142
        $region38: #{tpu_custom_call.1} parent=23 // pred_check_branch
          %407 = sbr.rel (%p405) target = $region40
        $region39: #{tpu_custom_call.1} parent=23 // pred_region
          #allocation19 [shape = 'u32[6]{0}', space=smem, size = 0x18, scoped, tag = 'DMA stride descriptor']
          %s408 = sand.u32 %s24, 1
          %s409 = scalar_lea.sflag [#allocation9], %s408
          %s410 = sand.u32 %s132, 1
          %s411 = smul.addr %s410, 64
          %s412 = scalar_lea.vmem [#allocation8], %s411
          %s413 = smul.u32 2, %s31
          %s414 = smul.u32 8, %s32
          %s416 = ssub.s32 1024, 1024
          %417 = vsyncadd %s409, %s416
          %s418 = smul.addr %s414, 2
          %s419 = sadd.s32 1, %s418
          %s420 = sadd.s32 %s419, 16
          %s421 = smul.addr %s413, 32
          %s422 = sadd.s32 %s420, %s421
          %s423 = smul.addr %s422, 64
          %s424 = scalar_lea.hbm %s3, %s423
          %s426 = sshll.u32 1, 14
          %s427 = sxor.u32 4294967295, %s426
          %s429 = sld [smem:[#allocation0]]
          %s430 = sadd.s32 2, %s429
          %s432 = sshll.u32 7, 26
          %s433 = sxor.u32 4294967295, %s432
          %s434 = sand.u32 0, %s433
          %s435 = sshll.u32 %s430, 26
          %s436 = sor.u32 %s434, %s435
          %s437 = sshll.u32 %s412, 4
          %s438 = int_to_ptr.vmem [resolvable:$true] %s437
          %444 = sst [smem:[#allocation19]] 2048
          %s445 = scalar_lea.smem [#allocation19], 1
          %446 = sst [smem:[%s445]] 512
          %s447 = scalar_lea.smem [#allocation19], 2
          %448 = sst [smem:[%s447]] 8
          %s449 = scalar_lea.smem [#allocation19], 3
          %450 = sst [smem:[%s449]] 128
          %s451 = scalar_lea.smem [#allocation19], 4
          %452 = sst [smem:[%s451]] 64
          %s453 = scalar_lea.smem [#allocation19], 5
          %454 = sst [smem:[%s453]] 4
          %456 = dma.general %s424, 1024, %s438, %s409, 131072, [#allocation19], %s436, 0
        $region40: #{tpu_custom_call.1} parent=23 // pred_fallthru
          _
      $region24: #{tpu_custom_call.1} parent=5 // pred_fallthru
        _
      %p457 = scmp.le.s32.totalorder 1, %s24
      %p458 = scmp.lt.s32.totalorder %s24, 3
      %p459 = pnand %p457, %p458
      %p460 = pneg %p459
      // Predicated region
      $region41: #{tpu_custom_call.1} parent=5 // pred_check
        _
      $region42: #{tpu_custom_call.1} parent=5 // pred_check_branch
        %462 = sbr.rel (%p459) target = $region44
      $region43: #{tpu_custom_call.1} parent=5 // pred_region
        %s463 = ssub.s32 %s24, 1
        %s464 = sand.u32 %s51, 1
        %s465 = scalar_lea.sflag [#allocation3], %s464
        %s466 = sand.u32 %s51, 1
        %s467 = smul.addr %s466, 64
        %s468 = scalar_lea.vmem [#allocation2], %s467
        // Predicated region
        $region45: #{tpu_custom_call.1} parent=43 // pred_check
          %p469 = pneg %p64
        $region46: #{tpu_custom_call.1} parent=43 // pred_check_branch
          %471 = sbr.rel (%p469) target = $region48
        $region47: #{tpu_custom_call.1} parent=43 // pred_region
          %472 = dma.done %s465, 1024
        $region48: #{tpu_custom_call.1} parent=43 // pred_fallthru
          _
        %s473 = sand.u32 %s29, 1
        %s474 = scalar_lea.sflag [#allocation6], %s473
        %s475 = sand.u32 %s79, 1
        %s476 = smul.addr %s475, 64
        %s477 = scalar_lea.vmem [#allocation5], %s476
        // Predicated region
        $region49: #{tpu_custom_call.1} parent=43 // pred_check
          %p478 = pneg %p92
        $region50: #{tpu_custom_call.1} parent=43 // pred_check_branch
          %480 = sbr.rel (%p478) target = $region52
        $region51: #{tpu_custom_call.1} parent=43 // pred_region
          %481 = dma.done %s474, 1024
        $region52: #{tpu_custom_call.1} parent=43 // pred_fallthru
          _
        %s482 = sand.u32 %s29, 1
        %s483 = scalar_lea.sflag [#allocation6], %s482
        %s484 = sand.u32 %s107, 1
        %s485 = smul.addr %s484, 64
        %s486 = scalar_lea.vmem [#allocation7], %s485
        // Predicated region
        $region53: #{tpu_custom_call.1} parent=43 // pred_check
          %p487 = pneg %p120
        $region54: #{tpu_custom_call.1} parent=43 // pred_check_branch
          %489 = sbr.rel (%p487) target = $region56
        $region55: #{tpu_custom_call.1} parent=43 // pred_region
          %490 = dma.done %s483, 1024
        $region56: #{tpu_custom_call.1} parent=43 // pred_fallthru
          _
        %s491 = sand.u32 %s29, 1
        %s492 = scalar_lea.sflag [#allocation9], %s491
        %s493 = sand.u32 %s135, 1
        %s494 = smul.addr %s493, 64
        %s495 = scalar_lea.vmem [#allocation8], %s494
        // Predicated region
        $region57: #{tpu_custom_call.1} parent=43 // pred_check
          %p496 = pneg %p148
        $region58: #{tpu_custom_call.1} parent=43 // pred_check_branch
          %498 = sbr.rel (%p496) target = $region60
        $region59: #{tpu_custom_call.1} parent=43 // pred_region
          %499 = dma.done %s492, 1024
        $region60: #{tpu_custom_call.1} parent=43 // pred_fallthru
          _
        // Predicated region
        $region61: #{tpu_custom_call.1} parent=43 // pred_check
          %p500 = pneg %p169
        $region62: #{tpu_custom_call.1} parent=43 // pred_check_branch
          %502 = sbr.rel (%p500) target = $region64
        $region63: #{tpu_custom_call.1} parent=43 // pred_region
          %503 = dma.done [#allocation9], 4096
        $region64: #{tpu_custom_call.1} parent=43 // pred_fallthru
          _
        %s504 = sand.u32 %s51, 1
        %s505 = scalar_lea.sflag [#allocation3], %s504
        %s506 = sand.u32 %s51, 1
        %s507 = smul.addr %s506, 64
        %s508 = scalar_lea.vmem [#allocation2], %s507
        %p509 = pneg %p64
        %p510 = pneg %p61
        %s511 = sand.u32 %s29, 1
        %s512 = scalar_lea.sflag [#allocation6], %s511
        %s513 = sand.u32 %s79, 1
        %s514 = smul.addr %s513, 64
        %s515 = scalar_lea.vmem [#allocation5], %s514
        %p516 = pneg %p92
        %p517 = pneg %p89
        %s518 = sand.u32 %s29, 1
        %s519 = scalar_lea.sflag [#allocation6], %s518
        %s520 = sand.u32 %s107, 1
        %s521 = smul.addr %s520, 64
        %s522 = scalar_lea.vmem [#allocation7], %s521
        %p523 = pneg %p120
        %p524 = pneg %p117
        %s525 = sand.u32 %s29, 1
        %s526 = scalar_lea.sflag [#allocation9], %s525
        %s527 = sand.u32 %s135, 1
        %s528 = smul.addr %s527, 64
        %s529 = scalar_lea.vmem [#allocation8], %s528
        %p530 = pneg %p148
        %p531 = pneg %p145
        %p532 = pneg %p169
        %p533 = pneg %p166
        %p534 = pneg %p190
        %p535 = pneg %p187
        %p536 = pneg %p218
        %p537 = pneg %p215
        %s538 = sand.u32 %s205, 1
        %s539 = scalar_lea.sflag [#allocation4], %s538
        %s540 = sand.u32 %s205, 1
        %s541 = smul.addr %s540, 64
        %s542 = scalar_lea.vmem [#allocation11], %s541
        %s543 = smul.u32 2, %s33
        %s544 = smul.u32 8, %s34
        %s545 = smul.u32 2, %s33
        %s546 = smul.u32 8, %s34
        %s547 = smul.u32 2, %s33
        %s548 = smul.u32 8, %s34
        %s549 = smul.u32 2, %s33
        %s550 = smul.u32 8, %s34
        %v552 = vld [vmem:[%s468] sm:$0xf]
        %v553 = vld [vmem:[%s468 + $0x4] sm:$0xf]
        %v554 = vld [vmem:[%s468 + $0x8] sm:$0xf]
        %v555 = vld [vmem:[%s468 + $0xc] sm:$0xf]
        %v556 = vld [vmem:[%s468 + $0x10] sm:$0xf]
        %v557 = vld [vmem:[%s468 + $0x14] sm:$0xf]
        %v558 = vld [vmem:[%s468 + $0x18] sm:$0xf]
        %v559 = vld [vmem:[%s468 + $0x1c] sm:$0xf]
        %v560 = vld [vmem:[%s468 + $0x20] sm:$0xf]
        %v561 = vld [vmem:[%s468 + $0x24] sm:$0xf]
        %v562 = vld [vmem:[%s468 + $0x28] sm:$0xf]
        %v563 = vld [vmem:[%s468 + $0x2c] sm:$0xf]
        %v564 = vld [vmem:[%s468 + $0x30] sm:$0xf]
        %v565 = vld [vmem:[%s468 + $0x34] sm:$0xf]
        %v566 = vld [vmem:[%s468 + $0x38] sm:$0xf]
        %v567 = vld [vmem:[%s468 + $0x3c] sm:$0xf]
        %v568 = vunpack.c.l.bf16 %v552
        %v569 = vunpack.c.l.bf16 %v553
        %v570 = vunpack.c.l.bf16 %v554
        %v571 = vunpack.c.l.bf16 %v555
        %v572 = vunpack.c.l.bf16 %v556
        %v573 = vunpack.c.l.bf16 %v557
        %v574 = vunpack.c.l.bf16 %v558
        %v575 = vunpack.c.l.bf16 %v559
        %v576 = vunpack.c.l.bf16 %v560
        %v577 = vunpack.c.l.bf16 %v561
        %v578 = vunpack.c.l.bf16 %v562
        %v579 = vunpack.c.l.bf16 %v563
        %v580 = vunpack.c.l.bf16 %v564
        %v581 = vunpack.c.l.bf16 %v565
        %v582 = vunpack.c.l.bf16 %v566
        %v583 = vunpack.c.l.bf16 %v567
        %584 = vadd.xlane.f32.xlu0 %v568
        %v585 = vpop.xlane.xlu0 %584
        %586 = vadd.xlane.f32.xlu0 %v569
        %v587 = vpop.xlane.xlu0 %586
        %588 = vadd.xlane.f32.xlu0 %v570
        %v589 = vpop.xlane.xlu0 %588
        %590 = vadd.xlane.f32.xlu0 %v571
        %v591 = vpop.xlane.xlu0 %590
        %592 = vadd.xlane.f32.xlu0 %v572
        %v593 = vpop.xlane.xlu0 %592
        %594 = vadd.xlane.f32.xlu0 %v573
        %v595 = vpop.xlane.xlu0 %594
        %596 = vadd.xlane.f32.xlu0 %v574
        %v597 = vpop.xlane.xlu0 %596
        %598 = vadd.xlane.f32.xlu0 %v575
        %v599 = vpop.xlane.xlu0 %598
        %600 = vadd.xlane.f32.xlu0 %v576
        %v601 = vpop.xlane.xlu0 %600
        %602 = vadd.xlane.f32.xlu0 %v577
        %v603 = vpop.xlane.xlu0 %602
        %604 = vadd.xlane.f32.xlu0 %v578
        %v605 = vpop.xlane.xlu0 %604
        %606 = vadd.xlane.f32.xlu0 %v579
        %v607 = vpop.xlane.xlu0 %606
        %608 = vadd.xlane.f32.xlu0 %v580
        %v609 = vpop.xlane.xlu0 %608
        %610 = vadd.xlane.f32.xlu0 %v581
        %v611 = vpop.xlane.xlu0 %610
        %612 = vadd.xlane.f32.xlu0 %v582
        %v613 = vpop.xlane.xlu0 %612
        %614 = vadd.xlane.f32.xlu0 %v583
        %v615 = vpop.xlane.xlu0 %614
        %v616 = vmul.f32 %v568, %v568
        %v617 = vmul.f32 %v569, %v569
        %v618 = vmul.f32 %v570, %v570
        %v619 = vmul.f32 %v571, %v571
        %v620 = vmul.f32 %v572, %v572
        %v621 = vmul.f32 %v573, %v573
        %v622 = vmul.f32 %v574, %v574
        %v623 = vmul.f32 %v575, %v575
        %v624 = vmul.f32 %v576, %v576
        %v625 = vmul.f32 %v577, %v577
        %v626 = vmul.f32 %v578, %v578
        %v627 = vmul.f32 %v579, %v579
        %v628 = vmul.f32 %v580, %v580
        %v629 = vmul.f32 %v581, %v581
        %v630 = vmul.f32 %v582, %v582
        %v631 = vmul.f32 %v583, %v583
        %632 = vadd.xlane.f32.xlu0 %v616
        %v633 = vpop.xlane.xlu0 %632
        %634 = vadd.xlane.f32.xlu0 %v617
        %v635 = vpop.xlane.xlu0 %634
        %636 = vadd.xlane.f32.xlu0 %v618
        %v637 = vpop.xlane.xlu0 %636
        %638 = vadd.xlane.f32.xlu0 %v619
        %v639 = vpop.xlane.xlu0 %638
        %640 = vadd.xlane.f32.xlu0 %v620
        %v641 = vpop.xlane.xlu0 %640
        %642 = vadd.xlane.f32.xlu0 %v621
        %v643 = vpop.xlane.xlu0 %642
        %644 = vadd.xlane.f32.xlu0 %v622
        %v645 = vpop.xlane.xlu0 %644
        %646 = vadd.xlane.f32.xlu0 %v623
        %v647 = vpop.xlane.xlu0 %646
        %648 = vadd.xlane.f32.xlu0 %v624
        %v649 = vpop.xlane.xlu0 %648
        %650 = vadd.xlane.f32.xlu0 %v625
        %v651 = vpop.xlane.xlu0 %650
        %652 = vadd.xlane.f32.xlu0 %v626
        %v653 = vpop.xlane.xlu0 %652
        %654 = vadd.xlane.f32.xlu0 %v627
        %v655 = vpop.xlane.xlu0 %654
        %656 = vadd.xlane.f32.xlu0 %v628
        %v657 = vpop.xlane.xlu0 %656
        %658 = vadd.xlane.f32.xlu0 %v629
        %v659 = vpop.xlane.xlu0 %658
        %660 = vadd.xlane.f32.xlu0 %v630
        %v661 = vpop.xlane.xlu0 %660
        %662 = vadd.xlane.f32.xlu0 %v631
        %v663 = vpop.xlane.xlu0 %662
        %v664 = vld [vmem:[#allocation10] sm:$0xf]
        %v665 = vld [vmem:[#allocation10 + $0x4] sm:$0xf]
        %v666 = vld [vmem:[#allocation10 + $0x8] sm:$0xf]
        %v667 = vld [vmem:[#allocation10 + $0xc] sm:$0xf]
        %v668 = vld [vmem:[#allocation10 + $0x10] sm:$0xf]
        %v669 = vld [vmem:[#allocation10 + $0x14] sm:$0xf]
        %v670 = vld [vmem:[#allocation10 + $0x18] sm:$0xf]
        %v671 = vld [vmem:[#allocation10 + $0x1c] sm:$0xf]
        %v672 = vld [vmem:[#allocation10 + $0x20] sm:$0xf]
        %v673 = vld [vmem:[#allocation10 + $0x24] sm:$0xf]
        %v674 = vld [vmem:[#allocation10 + $0x28] sm:$0xf]
        %v675 = vld [vmem:[#allocation10 + $0x2c] sm:$0xf]
        %v676 = vld [vmem:[#allocation10 + $0x30] sm:$0xf]
        %v677 = vld [vmem:[#allocation10 + $0x34] sm:$0xf]
        %v678 = vld [vmem:[#allocation10 + $0x38] sm:$0xf]
        %v679 = vld [vmem:[#allocation10 + $0x3c] sm:$0xf]
        %v680 = vld [vmem:[%s477] sm:$0xf]
        %v681 = vld [vmem:[%s477 + $0x4] sm:$0xf]
        %v682 = vld [vmem:[%s477 + $0x8] sm:$0xf]
        %v683 = vld [vmem:[%s477 + $0xc] sm:$0xf]
        %v684 = vld [vmem:[%s477 + $0x10] sm:$0xf]
        %v685 = vld [vmem:[%s477 + $0x14] sm:$0xf]
        %v686 = vld [vmem:[%s477 + $0x18] sm:$0xf]
        %v687 = vld [vmem:[%s477 + $0x1c] sm:$0xf]
        %v688 = vld [vmem:[%s477 + $0x20] sm:$0xf]
        %v689 = vld [vmem:[%s477 + $0x24] sm:$0xf]
        %v690 = vld [vmem:[%s477 + $0x28] sm:$0xf]
        %v691 = vld [vmem:[%s477 + $0x2c] sm:$0xf]
        %v692 = vld [vmem:[%s477 + $0x30] sm:$0xf]
        %v693 = vld [vmem:[%s477 + $0x34] sm:$0xf]
        %v694 = vld [vmem:[%s477 + $0x38] sm:$0xf]
        %v695 = vld [vmem:[%s477 + $0x3c] sm:$0xf]
        %v696 = vunpack.c.l.bf16 %v680
        %v697 = vunpack.c.l.bf16 %v681
        %v698 = vunpack.c.l.bf16 %v682
        %v699 = vunpack.c.l.bf16 %v683
        %v700 = vunpack.c.l.bf16 %v684
        %v701 = vunpack.c.l.bf16 %v685
        %v702 = vunpack.c.l.bf16 %v686
        %v703 = vunpack.c.l.bf16 %v687
        %v704 = vunpack.c.l.bf16 %v688
        %v705 = vunpack.c.l.bf16 %v689
        %v706 = vunpack.c.l.bf16 %v690
        %v707 = vunpack.c.l.bf16 %v691
        %v708 = vunpack.c.l.bf16 %v692
        %v709 = vunpack.c.l.bf16 %v693
        %v710 = vunpack.c.l.bf16 %v694
        %v711 = vunpack.c.l.bf16 %v695
        %712 = vadd.xlane.f32.xlu0 %v696
        %v713 = vpop.xlane.xlu0 %712
        %714 = vadd.xlane.f32.xlu0 %v697
        %v715 = vpop.xlane.xlu0 %714
        %716 = vadd.xlane.f32.xlu0 %v698
        %v717 = vpop.xlane.xlu0 %716
        %718 = vadd.xlane.f32.xlu0 %v699
        %v719 = vpop.xlane.xlu0 %718
        %720 = vadd.xlane.f32.xlu0 %v700
        %v721 = vpop.xlane.xlu0 %720
        %722 = vadd.xlane.f32.xlu0 %v701
        %v723 = vpop.xlane.xlu0 %722
        %724 = vadd.xlane.f32.xlu0 %v702
        %v725 = vpop.xlane.xlu0 %724
        %726 = vadd.xlane.f32.xlu0 %v703
        %v727 = vpop.xlane.xlu0 %726
        %728 = vadd.xlane.f32.xlu0 %v704
        %v729 = vpop.xlane.xlu0 %728
        %730 = vadd.xlane.f32.xlu0 %v705
        %v731 = vpop.xlane.xlu0 %730
        %732 = vadd.xlane.f32.xlu0 %v706
        %v733 = vpop.xlane.xlu0 %732
        %734 = vadd.xlane.f32.xlu0 %v707
        %v735 = vpop.xlane.xlu0 %734
        %736 = vadd.xlane.f32.xlu0 %v708
        %v737 = vpop.xlane.xlu0 %736
        %738 = vadd.xlane.f32.xlu0 %v709
        %v739 = vpop.xlane.xlu0 %738
        %740 = vadd.xlane.f32.xlu0 %v710
        %v741 = vpop.xlane.xlu0 %740
        %742 = vadd.xlane.f32.xlu0 %v711
        %v743 = vpop.xlane.xlu0 %742
        %v744 = vmul.f32 %v696, %v696
        %v745 = vmul.f32 %v697, %v697
        %v746 = vmul.f32 %v698, %v698
        %v747 = vmul.f32 %v699, %v699
        %v748 = vmul.f32 %v700, %v700
        %v749 = vmul.f32 %v701, %v701
        %v750 = vmul.f32 %v702, %v702
        %v751 = vmul.f32 %v703, %v703
        %v752 = vmul.f32 %v704, %v704
        %v753 = vmul.f32 %v705, %v705
        %v754 = vmul.f32 %v706, %v706
        %v755 = vmul.f32 %v707, %v707
        %v756 = vmul.f32 %v708, %v708
        %v757 = vmul.f32 %v709, %v709
        %v758 = vmul.f32 %v710, %v710
        %v759 = vmul.f32 %v711, %v711
        %760 = vadd.xlane.f32.xlu0 %v744
        %v761 = vpop.xlane.xlu0 %760
        %762 = vadd.xlane.f32.xlu0 %v745
        %v763 = vpop.xlane.xlu0 %762
        %764 = vadd.xlane.f32.xlu0 %v746
        %v765 = vpop.xlane.xlu0 %764
        %766 = vadd.xlane.f32.xlu0 %v747
        %v767 = vpop.xlane.xlu0 %766
        %768 = vadd.xlane.f32.xlu0 %v748
        %v769 = vpop.xlane.xlu0 %768
        %770 = vadd.xlane.f32.xlu0 %v749
        %v771 = vpop.xlane.xlu0 %770
        %772 = vadd.xlane.f32.xlu0 %v750
        %v773 = vpop.xlane.xlu0 %772
        %774 = vadd.xlane.f32.xlu0 %v751
        %v775 = vpop.xlane.xlu0 %774
        %776 = vadd.xlane.f32.xlu0 %v752
        %v777 = vpop.xlane.xlu0 %776
        %778 = vadd.xlane.f32.xlu0 %v753
        %v779 = vpop.xlane.xlu0 %778
        %780 = vadd.xlane.f32.xlu0 %v754
        %v781 = vpop.xlane.xlu0 %780
        %782 = vadd.xlane.f32.xlu0 %v755
        %v783 = vpop.xlane.xlu0 %782
        %784 = vadd.xlane.f32.xlu0 %v756
        %v785 = vpop.xlane.xlu0 %784
        %786 = vadd.xlane.f32.xlu0 %v757
        %v787 = vpop.xlane.xlu0 %786
        %788 = vadd.xlane.f32.xlu0 %v758
        %v789 = vpop.xlane.xlu0 %788
        %790 = vadd.xlane.f32.xlu0 %v759
        %v791 = vpop.xlane.xlu0 %790
        %v792 = vld [vmem:[#allocation10 + $0x40] sm:$0xf]
        %v793 = vld [vmem:[#allocation10 + $0x44] sm:$0xf]
        %v794 = vld [vmem:[#allocation10 + $0x48] sm:$0xf]
        %v795 = vld [vmem:[#allocation10 + $0x4c] sm:$0xf]
        %v796 = vld [vmem:[#allocation10 + $0x50] sm:$0xf]
        %v797 = vld [vmem:[#allocation10 + $0x54] sm:$0xf]
        %v798 = vld [vmem:[#allocation10 + $0x58] sm:$0xf]
        %v799 = vld [vmem:[#allocation10 + $0x5c] sm:$0xf]
        %v800 = vld [vmem:[#allocation10 + $0x60] sm:$0xf]
        %v801 = vld [vmem:[#allocation10 + $0x64] sm:$0xf]
        %v802 = vld [vmem:[#allocation10 + $0x68] sm:$0xf]
        %v803 = vld [vmem:[#allocation10 + $0x6c] sm:$0xf]
        %v804 = vld [vmem:[#allocation10 + $0x70] sm:$0xf]
        %v805 = vld [vmem:[#allocation10 + $0x74] sm:$0xf]
        %v806 = vld [vmem:[#allocation10 + $0x78] sm:$0xf]
        %v807 = vld [vmem:[#allocation10 + $0x7c] sm:$0xf]
        %v824 = vunpack.c.l.b16 %v680
        %v825 = vunpack.c.l.b16 %v681
        %v826 = vunpack.c.l.b16 %v682
        %v827 = vunpack.c.l.b16 %v683
        %v828 = vunpack.c.l.b16 %v684
        %v829 = vunpack.c.l.b16 %v685
        %v830 = vunpack.c.l.b16 %v686
        %v831 = vunpack.c.l.b16 %v687
        %v832 = vunpack.c.l.b16 %v688
        %v833 = vunpack.c.l.b16 %v689
        %v834 = vunpack.c.l.b16 %v690
        %v835 = vunpack.c.l.b16 %v691
        %v836 = vunpack.c.l.b16 %v692
        %v837 = vunpack.c.l.b16 %v693
        %v838 = vunpack.c.l.b16 %v694
        %v839 = vunpack.c.l.b16 %v695
        %v840 = vpack.c.b16 %v825, %v824
        %v841 = vpack.c.b16 %v827, %v826
        %v842 = vpack.c.b16 %v829, %v828
        %v843 = vpack.c.b16 %v831, %v830
        %v844 = vpack.c.b16 %v833, %v832
        %v845 = vpack.c.b16 %v835, %v834
        %v846 = vpack.c.b16 %v837, %v836
        %v847 = vpack.c.b16 %v839, %v838
        %v872 = vunpack.c.l.b16 %v792
        %v873 = vunpack.c.l.b16 %v793
        %v874 = vunpack.c.l.b16 %v794
        %v875 = vunpack.c.l.b16 %v795
        %v876 = vunpack.c.l.b16 %v796
        %v877 = vunpack.c.l.b16 %v797
        %v878 = vunpack.c.l.b16 %v798
        %v879 = vunpack.c.l.b16 %v799
        %v880 = vunpack.c.l.b16 %v800
        %v881 = vunpack.c.l.b16 %v801
        %v882 = vunpack.c.l.b16 %v802
        %v883 = vunpack.c.l.b16 %v803
        %v884 = vunpack.c.l.b16 %v804
        %v885 = vunpack.c.l.b16 %v805
        %v886 = vunpack.c.l.b16 %v806
        %v887 = vunpack.c.l.b16 %v807
        %v888 = vpack.c.b16 %v873, %v872
        %v889 = vpack.c.b16 %v875, %v874
        %v890 = vpack.c.b16 %v877, %v876
        %v891 = vpack.c.b16 %v879, %v878
        %v892 = vpack.c.b16 %v881, %v880
        %v893 = vpack.c.b16 %v883, %v882
        %v894 = vpack.c.b16 %v885, %v884
        %v895 = vpack.c.b16 %v887, %v886
        %904 = vmatprep.subr.bf16.mxu0 0
        %905 = vmatpush1.bf16.msra.mxu0 %v895
        %906 = vmatprep.subr.bf16.mxu0 0
        %907 = vmatpush1.bf16.msra.mxu0 %v894
        %908 = vmatprep.subr.bf16.mxu0 0
        %909 = vmatpush1.bf16.msra.mxu0 %v893
        %910 = vmatprep.subr.bf16.mxu0 0
        %911 = vmatpush1.bf16.msra.mxu0 %v892
        %912 = vmatprep.subr.bf16.mxu0 0
        %913 = vmatpush1.bf16.msra.mxu0 %v891
        %914 = vmatprep.subr.bf16.mxu0 0
        %915 = vmatpush1.bf16.msra.mxu0 %v890
        %916 = vmatprep.subr.bf16.mxu0 0
        %917 = vmatpush1.bf16.msra.mxu0 %v889
        %918 = vmatprep.subr.bf16.mxu0 0
        %919 = vmatpush1.bf16.msra.mxu0 %v888
        %920 = vmatprep.subr.bf16.mxu0 0
        %921 = vmatpush2.bf16.msra.mxu0 0
        %922 = vmatprep.subr.bf16.mxu0 0
        %923 = vmatpush2.bf16.msra.mxu0 0
        %924 = vmatprep.subr.bf16.mxu0 0
        %925 = vmatpush2.bf16.msra.mxu0 0
        %926 = vmatprep.subr.bf16.mxu0 0
        %927 = vmatpush2.bf16.msra.mxu0 0
        %928 = vmatprep.subr.bf16.mxu0 0
        %929 = vmatpush2.bf16.msra.mxu0 0
        %930 = vmatprep.subr.bf16.mxu0 0
        %931 = vmatpush2.bf16.msra.mxu0 0
        %932 = vmatprep.subr.bf16.mxu0 0
        %933 = vmatpush2.bf16.msra.mxu0 0
        %934 = vmatprep.subr.bf16.mxu0 0
        %935 = vmatpush2.bf16.msra.mxu0 0
        %936 = vmatprep.mubr.bf16.mxu0 0
        %937 = vmatmul.mubr.bf16.gmra.mxu0 %v840
        %v938 = vpop.f32.mrf.mxu0
        %v939 = vadd.f32 0.0, %v938
        %v940 = vpop.f32.mrf.mxu0
        %v941 = vpop.f32.mrf.mxu0
        %v942 = vadd.f32 0.0, %v941
        %v943 = vpop.f32.mrf.mxu0
        %944 = vmatprep.mubr.bf16.mxu0 0
        %945 = vmatmul.mubr.bf16.gmra.mxu0 %v841
        %v946 = vpop.f32.mrf.mxu0
        %v947 = vadd.f32 0.0, %v946
        %v948 = vpop.f32.mrf.mxu0
        %v949 = vpop.f32.mrf.mxu0
        %v950 = vadd.f32 0.0, %v949
        %v951 = vpop.f32.mrf.mxu0
        %952 = vmatprep.mubr.bf16.mxu0 0
        %953 = vmatmul.mubr.bf16.gmra.mxu0 %v842
        %v954 = vpop.f32.mrf.mxu0
        %v955 = vadd.f32 0.0, %v954
        %v956 = vpop.f32.mrf.mxu0
        %v957 = vpop.f32.mrf.mxu0
        %v958 = vadd.f32 0.0, %v957
        %v959 = vpop.f32.mrf.mxu0
        %960 = vmatprep.mubr.bf16.mxu0 0
        %961 = vmatmul.mubr.bf16.gmra.mxu0 %v843
        %v962 = vpop.f32.mrf.mxu0
        %v963 = vadd.f32 0.0, %v962
        %v964 = vpop.f32.mrf.mxu0
        %v965 = vpop.f32.mrf.mxu0
        %v966 = vadd.f32 0.0, %v965
        %v967 = vpop.f32.mrf.mxu0
        %968 = vmatprep.mubr.bf16.mxu0 0
        %969 = vmatmul.mubr.bf16.gmra.mxu0 %v844
        %v970 = vpop.f32.mrf.mxu0
        %v971 = vadd.f32 0.0, %v970
        %v972 = vpop.f32.mrf.mxu0
        %v973 = vpop.f32.mrf.mxu0
        %v974 = vadd.f32 0.0, %v973
        %v975 = vpop.f32.mrf.mxu0
        %976 = vmatprep.mubr.bf16.mxu0 0
        %977 = vmatmul.mubr.bf16.gmra.mxu0 %v845
        %v978 = vpop.f32.mrf.mxu0
        %v979 = vadd.f32 0.0, %v978
        %v980 = vpop.f32.mrf.mxu0
        %v981 = vpop.f32.mrf.mxu0
        %v982 = vadd.f32 0.0, %v981
        %v983 = vpop.f32.mrf.mxu0
        %984 = vmatprep.mubr.bf16.mxu0 0
        %985 = vmatmul.mubr.bf16.gmra.mxu0 %v846
        %v986 = vpop.f32.mrf.mxu0
        %v987 = vadd.f32 0.0, %v986
        %v988 = vpop.f32.mrf.mxu0
        %v989 = vpop.f32.mrf.mxu0
        %v990 = vadd.f32 0.0, %v989
        %v991 = vpop.f32.mrf.mxu0
        %992 = vmatprep.mubr.bf16.mxu0 0
        %993 = vmatmul.mubr.bf16.gmra.mxu0 %v847
        %v994 = vpop.f32.mrf.mxu0
        %v995 = vadd.f32 0.0, %v994
        %v996 = vpop.f32.mrf.mxu0
        %v997 = vpop.f32.mrf.mxu0
        %v998 = vadd.f32 0.0, %v997
        %v999 = vpop.f32.mrf.mxu0
        %1000 = vdwg.mxu0
        %v1001 = vadd.f32 %v585, %v713
        %v1002 = vadd.f32 %v587, %v715
        %v1003 = vadd.f32 %v589, %v717
        %v1004 = vadd.f32 %v591, %v719
        %v1005 = vadd.f32 %v593, %v721
        %v1006 = vadd.f32 %v595, %v723
        %v1007 = vadd.f32 %v597, %v725
        %v1008 = vadd.f32 %v599, %v727
        %v1009 = vadd.f32 %v601, %v729
        %v1010 = vadd.f32 %v603, %v731
        %v1011 = vadd.f32 %v605, %v733
        %v1012 = vadd.f32 %v607, %v735
        %v1013 = vadd.f32 %v609, %v737
        %v1014 = vadd.f32 %v611, %v739
        %v1015 = vadd.f32 %v613, %v741
        %v1016 = vadd.f32 %v615, %v743
        %v1017 = vadd.f32 %v633, %v761
        %v1018 = vadd.f32 %v635, %v763
        %v1019 = vadd.f32 %v637, %v765
        %v1020 = vadd.f32 %v639, %v767
        %v1021 = vadd.f32 %v641, %v769
        %v1022 = vadd.f32 %v643, %v771
        %v1023 = vadd.f32 %v645, %v773
        %v1024 = vadd.f32 %v647, %v775
        %v1025 = vadd.f32 %v649, %v777
        %v1026 = vadd.f32 %v651, %v779
        %v1027 = vadd.f32 %v653, %v781
        %v1028 = vadd.f32 %v655, %v783
        %v1029 = vadd.f32 %v657, %v785
        %v1030 = vadd.f32 %v659, %v787
        %v1031 = vadd.f32 %v661, %v789
        %v1032 = vadd.f32 %v663, %v791
        %v1049 = vunpack.c.l.b16 %v552
        %v1050 = vunpack.c.l.b16 %v553
        %v1051 = vunpack.c.l.b16 %v554
        %v1052 = vunpack.c.l.b16 %v555
        %v1053 = vunpack.c.l.b16 %v556
        %v1054 = vunpack.c.l.b16 %v557
        %v1055 = vunpack.c.l.b16 %v558
        %v1056 = vunpack.c.l.b16 %v559
        %v1057 = vunpack.c.l.b16 %v560
        %v1058 = vunpack.c.l.b16 %v561
        %v1059 = vunpack.c.l.b16 %v562
        %v1060 = vunpack.c.l.b16 %v563
        %v1061 = vunpack.c.l.b16 %v564
        %v1062 = vunpack.c.l.b16 %v565
        %v1063 = vunpack.c.l.b16 %v566
        %v1064 = vunpack.c.l.b16 %v567
        %v1065 = vpack.c.b16 %v1050, %v1049
        %v1066 = vpack.c.b16 %v1052, %v1051
        %v1067 = vpack.c.b16 %v1054, %v1053
        %v1068 = vpack.c.b16 %v1056, %v1055
        %v1069 = vpack.c.b16 %v1058, %v1057
        %v1070 = vpack.c.b16 %v1060, %v1059
        %v1071 = vpack.c.b16 %v1062, %v1061
        %v1072 = vpack.c.b16 %v1064, %v1063
        %v1097 = vunpack.c.l.b16 %v664
        %v1098 = vunpack.c.l.b16 %v665
        %v1099 = vunpack.c.l.b16 %v666
        %v1100 = vunpack.c.l.b16 %v667
        %v1101 = vunpack.c.l.b16 %v668
        %v1102 = vunpack.c.l.b16 %v669
        %v1103 = vunpack.c.l.b16 %v670
        %v1104 = vunpack.c.l.b16 %v671
        %v1105 = vunpack.c.l.b16 %v672
        %v1106 = vunpack.c.l.b16 %v673
        %v1107 = vunpack.c.l.b16 %v674
        %v1108 = vunpack.c.l.b16 %v675
        %v1109 = vunpack.c.l.b16 %v676
        %v1110 = vunpack.c.l.b16 %v677
        %v1111 = vunpack.c.l.b16 %v678
        %v1112 = vunpack.c.l.b16 %v679
        %v1113 = vpack.c.b16 %v1098, %v1097
        %v1114 = vpack.c.b16 %v1100, %v1099
        %v1115 = vpack.c.b16 %v1102, %v1101
        %v1116 = vpack.c.b16 %v1104, %v1103
        %v1117 = vpack.c.b16 %v1106, %v1105
        %v1118 = vpack.c.b16 %v1108, %v1107
        %v1119 = vpack.c.b16 %v1110, %v1109
        %v1120 = vpack.c.b16 %v1112, %v1111
        %1129 = vmatprep.subr.bf16.mxu0 0
        %1130 = vmatpush1.bf16.msra.mxu0 %v1120
        %1131 = vmatprep.subr.bf16.mxu0 0
        %1132 = vmatpush1.bf16.msra.mxu0 %v1119
        %1133 = vmatprep.subr.bf16.mxu0 0
        %1134 = vmatpush1.bf16.msra.mxu0 %v1118
        %1135 = vmatprep.subr.bf16.mxu0 0
        %1136 = vmatpush1.bf16.msra.mxu0 %v1117
        %1137 = vmatprep.subr.bf16.mxu0 0
        %1138 = vmatpush1.bf16.msra.mxu0 %v1116
        %1139 = vmatprep.subr.bf16.mxu0 0
        %1140 = vmatpush1.bf16.msra.mxu0 %v1115
        %1141 = vmatprep.subr.bf16.mxu0 0
        %1142 = vmatpush1.bf16.msra.mxu0 %v1114
        %1143 = vmatprep.subr.bf16.mxu0 0
        %1144 = vmatpush1.bf16.msra.mxu0 %v1113
        %1145 = vmatprep.subr.bf16.mxu0 0
        %1146 = vmatpush2.bf16.msra.mxu0 0
        %1147 = vmatprep.subr.bf16.mxu0 0
        %1148 = vmatpush2.bf16.msra.mxu0 0
        %1149 = vmatprep.subr.bf16.mxu0 0
        %1150 = vmatpush2.bf16.msra.mxu0 0
        %1151 = vmatprep.subr.bf16.mxu0 0
        %1152 = vmatpush2.bf16.msra.mxu0 0
        %1153 = vmatprep.subr.bf16.mxu0 0
        %1154 = vmatpush2.bf16.msra.mxu0 0
        %1155 = vmatprep.subr.bf16.mxu0 0
        %1156 = vmatpush2.bf16.msra.mxu0 0
        %1157 = vmatprep.subr.bf16.mxu0 0
        %1158 = vmatpush2.bf16.msra.mxu0 0
        %1159 = vmatprep.subr.bf16.mxu0 0
        %1160 = vmatpush2.bf16.msra.mxu0 0
        %1161 = vmatprep.mubr.bf16.mxu0 0
        %1162 = vmatmul.mubr.bf16.gmra.mxu0 %v1065
        %v1163 = vpop.f32.mrf.mxu0
        %v1164 = vadd.f32 %v939, %v1163
        %v1165 = vpop.f32.mrf.mxu0
        %v1166 = vpop.f32.mrf.mxu0
        %v1167 = vadd.f32 %v942, %v1166
        %v1168 = vpop.f32.mrf.mxu0
        %1169 = vmatprep.mubr.bf16.mxu0 0
        %1170 = vmatmul.mubr.bf16.gmra.mxu0 %v1066
        %v1171 = vpop.f32.mrf.mxu0
        %v1172 = vadd.f32 %v947, %v1171
        %v1173 = vpop.f32.mrf.mxu0
        %v1174 = vpop.f32.mrf.mxu0
        %v1175 = vadd.f32 %v950, %v1174
        %v1176 = vpop.f32.mrf.mxu0
        %1177 = vmatprep.mubr.bf16.mxu0 0
        %1178 = vmatmul.mubr.bf16.gmra.mxu0 %v1067
        %v1179 = vpop.f32.mrf.mxu0
        %v1180 = vadd.f32 %v955, %v1179
        %v1181 = vpop.f32.mrf.mxu0
        %v1182 = vpop.f32.mrf.mxu0
        %v1183 = vadd.f32 %v958, %v1182
        %v1184 = vpop.f32.mrf.mxu0
        %1185 = vmatprep.mubr.bf16.mxu0 0
        %1186 = vmatmul.mubr.bf16.gmra.mxu0 %v1068
        %v1187 = vpop.f32.mrf.mxu0
        %v1188 = vadd.f32 %v963, %v1187
        %v1189 = vpop.f32.mrf.mxu0
        %v1190 = vpop.f32.mrf.mxu0
        %v1191 = vadd.f32 %v966, %v1190
        %v1192 = vpop.f32.mrf.mxu0
        %1193 = vmatprep.mubr.bf16.mxu0 0
        %1194 = vmatmul.mubr.bf16.gmra.mxu0 %v1069
        %v1195 = vpop.f32.mrf.mxu0
        %v1196 = vadd.f32 %v971, %v1195
        %v1197 = vpop.f32.mrf.mxu0
        %v1198 = vpop.f32.mrf.mxu0
        %v1199 = vadd.f32 %v974, %v1198
        %v1200 = vpop.f32.mrf.mxu0
        %1201 = vmatprep.mubr.bf16.mxu0 0
        %1202 = vmatmul.mubr.bf16.gmra.mxu0 %v1070
        %v1203 = vpop.f32.mrf.mxu0
        %v1204 = vadd.f32 %v979, %v1203
        %v1205 = vpop.f32.mrf.mxu0
        %v1206 = vpop.f32.mrf.mxu0
        %v1207 = vadd.f32 %v982, %v1206
        %v1208 = vpop.f32.mrf.mxu0
        %1209 = vmatprep.mubr.bf16.mxu0 0
        %1210 = vmatmul.mubr.bf16.gmra.mxu0 %v1071
        %v1211 = vpop.f32.mrf.mxu0
        %v1212 = vadd.f32 %v987, %v1211
        %v1213 = vpop.f32.mrf.mxu0
        %v1214 = vpop.f32.mrf.mxu0
        %v1215 = vadd.f32 %v990, %v1214
        %v1216 = vpop.f32.mrf.mxu0
        %1217 = vmatprep.mubr.bf16.mxu0 0
        %1218 = vmatmul.mubr.bf16.gmra.mxu0 %v1072
        %v1219 = vpop.f32.mrf.mxu0
        %v1220 = vadd.f32 %v995, %v1219
        %v1221 = vpop.f32.mrf.mxu0
        %v1222 = vpop.f32.mrf.mxu0
        %v1223 = vadd.f32 %v998, %v1222
        %v1224 = vpop.f32.mrf.mxu0
        %1225 = vdwg.mxu0
        %v1226 = vld [vmem:[%s486] sm:$0xf]
        %v1227 = vld [vmem:[%s486 + $0x4] sm:$0xf]
        %v1228 = vld [vmem:[%s486 + $0x8] sm:$0xf]
        %v1229 = vld [vmem:[%s486 + $0xc] sm:$0xf]
        %v1230 = vld [vmem:[%s486 + $0x10] sm:$0xf]
        %v1231 = vld [vmem:[%s486 + $0x14] sm:$0xf]
        %v1232 = vld [vmem:[%s486 + $0x18] sm:$0xf]
        %v1233 = vld [vmem:[%s486 + $0x1c] sm:$0xf]
        %v1234 = vld [vmem:[%s486 + $0x20] sm:$0xf]
        %v1235 = vld [vmem:[%s486 + $0x24] sm:$0xf]
        %v1236 = vld [vmem:[%s486 + $0x28] sm:$0xf]
        %v1237 = vld [vmem:[%s486 + $0x2c] sm:$0xf]
        %v1238 = vld [vmem:[%s486 + $0x30] sm:$0xf]
        %v1239 = vld [vmem:[%s486 + $0x34] sm:$0xf]
        %v1240 = vld [vmem:[%s486 + $0x38] sm:$0xf]
        %v1241 = vld [vmem:[%s486 + $0x3c] sm:$0xf]
        %v1242 = vunpack.c.l.bf16 %v1226
        %v1243 = vunpack.c.l.bf16 %v1227
        %v1244 = vunpack.c.l.bf16 %v1228
        %v1245 = vunpack.c.l.bf16 %v1229
        %v1246 = vunpack.c.l.bf16 %v1230
        %v1247 = vunpack.c.l.bf16 %v1231
        %v1248 = vunpack.c.l.bf16 %v1232
        %v1249 = vunpack.c.l.bf16 %v1233
        %v1250 = vunpack.c.l.bf16 %v1234
        %v1251 = vunpack.c.l.bf16 %v1235
        %v1252 = vunpack.c.l.bf16 %v1236
        %v1253 = vunpack.c.l.bf16 %v1237
        %v1254 = vunpack.c.l.bf16 %v1238
        %v1255 = vunpack.c.l.bf16 %v1239
        %v1256 = vunpack.c.l.bf16 %v1240
        %v1257 = vunpack.c.l.bf16 %v1241
        %1258 = vadd.xlane.f32.xlu0 %v1242
        %v1259 = vpop.xlane.xlu0 %1258
        %1260 = vadd.xlane.f32.xlu0 %v1243
        %v1261 = vpop.xlane.xlu0 %1260
        %1262 = vadd.xlane.f32.xlu0 %v1244
        %v1263 = vpop.xlane.xlu0 %1262
        %1264 = vadd.xlane.f32.xlu0 %v1245
        %v1265 = vpop.xlane.xlu0 %1264
        %1266 = vadd.xlane.f32.xlu0 %v1246
        %v1267 = vpop.xlane.xlu0 %1266
        %1268 = vadd.xlane.f32.xlu0 %v1247
        %v1269 = vpop.xlane.xlu0 %1268
        %1270 = vadd.xlane.f32.xlu0 %v1248
        %v1271 = vpop.xlane.xlu0 %1270
        %1272 = vadd.xlane.f32.xlu0 %v1249
        %v1273 = vpop.xlane.xlu0 %1272
        %1274 = vadd.xlane.f32.xlu0 %v1250
        %v1275 = vpop.xlane.xlu0 %1274
        %1276 = vadd.xlane.f32.xlu0 %v1251
        %v1277 = vpop.xlane.xlu0 %1276
        %1278 = vadd.xlane.f32.xlu0 %v1252
        %v1279 = vpop.xlane.xlu0 %1278
        %1280 = vadd.xlane.f32.xlu0 %v1253
        %v1281 = vpop.xlane.xlu0 %1280
        %1282 = vadd.xlane.f32.xlu0 %v1254
        %v1283 = vpop.xlane.xlu0 %1282
        %1284 = vadd.xlane.f32.xlu0 %v1255
        %v1285 = vpop.xlane.xlu0 %1284
        %1286 = vadd.xlane.f32.xlu0 %v1256
        %v1287 = vpop.xlane.xlu0 %1286
        %1288 = vadd.xlane.f32.xlu0 %v1257
        %v1289 = vpop.xlane.xlu0 %1288
        %v1290 = vmul.f32 %v1242, %v1242
        %v1291 = vmul.f32 %v1243, %v1243
        %v1292 = vmul.f32 %v1244, %v1244
        %v1293 = vmul.f32 %v1245, %v1245
        %v1294 = vmul.f32 %v1246, %v1246
        %v1295 = vmul.f32 %v1247, %v1247
        %v1296 = vmul.f32 %v1248, %v1248
        %v1297 = vmul.f32 %v1249, %v1249
        %v1298 = vmul.f32 %v1250, %v1250
        %v1299 = vmul.f32 %v1251, %v1251
        %v1300 = vmul.f32 %v1252, %v1252
        %v1301 = vmul.f32 %v1253, %v1253
        %v1302 = vmul.f32 %v1254, %v1254
        %v1303 = vmul.f32 %v1255, %v1255
        %v1304 = vmul.f32 %v1256, %v1256
        %v1305 = vmul.f32 %v1257, %v1257
        %1306 = vadd.xlane.f32.xlu0 %v1290
        %v1307 = vpop.xlane.xlu0 %1306
        %1308 = vadd.xlane.f32.xlu0 %v1291
        %v1309 = vpop.xlane.xlu0 %1308
        %1310 = vadd.xlane.f32.xlu0 %v1292
        %v1311 = vpop.xlane.xlu0 %1310
        %1312 = vadd.xlane.f32.xlu0 %v1293
        %v1313 = vpop.xlane.xlu0 %1312
        %1314 = vadd.xlane.f32.xlu0 %v1294
        %v1315 = vpop.xlane.xlu0 %1314
        %1316 = vadd.xlane.f32.xlu0 %v1295
        %v1317 = vpop.xlane.xlu0 %1316
        %1318 = vadd.xlane.f32.xlu0 %v1296
        %v1319 = vpop.xlane.xlu0 %1318
        %1320 = vadd.xlane.f32.xlu0 %v1297
        %v1321 = vpop.xlane.xlu0 %1320
        %1322 = vadd.xlane.f32.xlu0 %v1298
        %v1323 = vpop.xlane.xlu0 %1322
        %1324 = vadd.xlane.f32.xlu0 %v1299
        %v1325 = vpop.xlane.xlu0 %1324
        %1326 = vadd.xlane.f32.xlu0 %v1300
        %v1327 = vpop.xlane.xlu0 %1326
        %1328 = vadd.xlane.f32.xlu0 %v1301
        %v1329 = vpop.xlane.xlu0 %1328
        %1330 = vadd.xlane.f32.xlu0 %v1302
        %v1331 = vpop.xlane.xlu0 %1330
        %1332 = vadd.xlane.f32.xlu0 %v1303
        %v1333 = vpop.xlane.xlu0 %1332
        %1334 = vadd.xlane.f32.xlu0 %v1304
        %v1335 = vpop.xlane.xlu0 %1334
        %1336 = vadd.xlane.f32.xlu0 %v1305
        %v1337 = vpop.xlane.xlu0 %1336
        %v1338 = vld [vmem:[#allocation10 + $0x80] sm:$0xf]
        %v1339 = vld [vmem:[#allocation10 + $0x84] sm:$0xf]
        %v1340 = vld [vmem:[#allocation10 + $0x88] sm:$0xf]
        %v1341 = vld [vmem:[#allocation10 + $0x8c] sm:$0xf]
        %v1342 = vld [vmem:[#allocation10 + $0x90] sm:$0xf]
        %v1343 = vld [vmem:[#allocation10 + $0x94] sm:$0xf]
        %v1344 = vld [vmem:[#allocation10 + $0x98] sm:$0xf]
        %v1345 = vld [vmem:[#allocation10 + $0x9c] sm:$0xf]
        %v1346 = vld [vmem:[#allocation10 + $0xa0] sm:$0xf]
        %v1347 = vld [vmem:[#allocation10 + $0xa4] sm:$0xf]
        %v1348 = vld [vmem:[#allocation10 + $0xa8] sm:$0xf]
        %v1349 = vld [vmem:[#allocation10 + $0xac] sm:$0xf]
        %v1350 = vld [vmem:[#allocation10 + $0xb0] sm:$0xf]
        %v1351 = vld [vmem:[#allocation10 + $0xb4] sm:$0xf]
        %v1352 = vld [vmem:[#allocation10 + $0xb8] sm:$0xf]
        %v1353 = vld [vmem:[#allocation10 + $0xbc] sm:$0xf]
        %v1370 = vunpack.c.l.b16 %v1226
        %v1371 = vunpack.c.l.b16 %v1227
        %v1372 = vunpack.c.l.b16 %v1228
        %v1373 = vunpack.c.l.b16 %v1229
        %v1374 = vunpack.c.l.b16 %v1230
        %v1375 = vunpack.c.l.b16 %v1231
        %v1376 = vunpack.c.l.b16 %v1232
        %v1377 = vunpack.c.l.b16 %v1233
        %v1378 = vunpack.c.l.b16 %v1234
        %v1379 = vunpack.c.l.b16 %v1235
        %v1380 = vunpack.c.l.b16 %v1236
        %v1381 = vunpack.c.l.b16 %v1237
        %v1382 = vunpack.c.l.b16 %v1238
        %v1383 = vunpack.c.l.b16 %v1239
        %v1384 = vunpack.c.l.b16 %v1240
        %v1385 = vunpack.c.l.b16 %v1241
        %v1386 = vpack.c.b16 %v1371, %v1370
        %v1387 = vpack.c.b16 %v1373, %v1372
        %v1388 = vpack.c.b16 %v1375, %v1374
        %v1389 = vpack.c.b16 %v1377, %v1376
        %v1390 = vpack.c.b16 %v1379, %v1378
        %v1391 = vpack.c.b16 %v1381, %v1380
        %v1392 = vpack.c.b16 %v1383, %v1382
        %v1393 = vpack.c.b16 %v1385, %v1384
        %v1418 = vunpack.c.l.b16 %v1338
        %v1419 = vunpack.c.l.b16 %v1339
        %v1420 = vunpack.c.l.b16 %v1340
        %v1421 = vunpack.c.l.b16 %v1341
        %v1422 = vunpack.c.l.b16 %v1342
        %v1423 = vunpack.c.l.b16 %v1343
        %v1424 = vunpack.c.l.b16 %v1344
        %v1425 = vunpack.c.l.b16 %v1345
        %v1426 = vunpack.c.l.b16 %v1346
        %v1427 = vunpack.c.l.b16 %v1347
        %v1428 = vunpack.c.l.b16 %v1348
        %v1429 = vunpack.c.l.b16 %v1349
        %v1430 = vunpack.c.l.b16 %v1350
        %v1431 = vunpack.c.l.b16 %v1351
        %v1432 = vunpack.c.l.b16 %v1352
        %v1433 = vunpack.c.l.b16 %v1353
        %v1434 = vpack.c.b16 %v1419, %v1418
        %v1435 = vpack.c.b16 %v1421, %v1420
        %v1436 = vpack.c.b16 %v1423, %v1422
        %v1437 = vpack.c.b16 %v1425, %v1424
        %v1438 = vpack.c.b16 %v1427, %v1426
        %v1439 = vpack.c.b16 %v1429, %v1428
        %v1440 = vpack.c.b16 %v1431, %v1430
        %v1441 = vpack.c.b16 %v1433, %v1432
        %1450 = vmatprep.subr.bf16.mxu0 0
        %1451 = vmatpush1.bf16.msra.mxu0 %v1441
        %1452 = vmatprep.subr.bf16.mxu0 0
        %1453 = vmatpush1.bf16.msra.mxu0 %v1440
        %1454 = vmatprep.subr.bf16.mxu0 0
        %1455 = vmatpush1.bf16.msra.mxu0 %v1439
        %1456 = vmatprep.subr.bf16.mxu0 0
        %1457 = vmatpush1.bf16.msra.mxu0 %v1438
        %1458 = vmatprep.subr.bf16.mxu0 0
        %1459 = vmatpush1.bf16.msra.mxu0 %v1437
        %1460 = vmatprep.subr.bf16.mxu0 0
        %1461 = vmatpush1.bf16.msra.mxu0 %v1436
        %1462 = vmatprep.subr.bf16.mxu0 0
        %1463 = vmatpush1.bf16.msra.mxu0 %v1435
        %1464 = vmatprep.subr.bf16.mxu0 0
        %1465 = vmatpush1.bf16.msra.mxu0 %v1434
        %1466 = vmatprep.subr.bf16.mxu0 0
        %1467 = vmatpush2.bf16.msra.mxu0 0
        %1468 = vmatprep.subr.bf16.mxu0 0
        %1469 = vmatpush2.bf16.msra.mxu0 0
        %1470 = vmatprep.subr.bf16.mxu0 0
        %1471 = vmatpush2.bf16.msra.mxu0 0
        %1472 = vmatprep.subr.bf16.mxu0 0
        %1473 = vmatpush2.bf16.msra.mxu0 0
        %1474 = vmatprep.subr.bf16.mxu0 0
        %1475 = vmatpush2.bf16.msra.mxu0 0
        %1476 = vmatprep.subr.bf16.mxu0 0
        %1477 = vmatpush2.bf16.msra.mxu0 0
        %1478 = vmatprep.subr.bf16.mxu0 0
        %1479 = vmatpush2.bf16.msra.mxu0 0
        %1480 = vmatprep.subr.bf16.mxu0 0
        %1481 = vmatpush2.bf16.msra.mxu0 0
        %1482 = vmatprep.mubr.bf16.mxu0 0
        %1483 = vmatmul.mubr.bf16.gmra.mxu0 %v1386
        %v1484 = vpop.f32.mrf.mxu0
        %v1485 = vadd.f32 0.0, %v1484
        %v1486 = vpop.f32.mrf.mxu0
        %v1487 = vpop.f32.mrf.mxu0
        %v1488 = vadd.f32 0.0, %v1487
        %v1489 = vpop.f32.mrf.mxu0
        %1490 = vmatprep.mubr.bf16.mxu0 0
        %1491 = vmatmul.mubr.bf16.gmra.mxu0 %v1387
        %v1492 = vpop.f32.mrf.mxu0
        %v1493 = vadd.f32 0.0, %v1492
        %v1494 = vpop.f32.mrf.mxu0
        %v1495 = vpop.f32.mrf.mxu0
        %v1496 = vadd.f32 0.0, %v1495
        %v1497 = vpop.f32.mrf.mxu0
        %1498 = vmatprep.mubr.bf16.mxu0 0
        %1499 = vmatmul.mubr.bf16.gmra.mxu0 %v1388
        %v1500 = vpop.f32.mrf.mxu0
        %v1501 = vadd.f32 0.0, %v1500
        %v1502 = vpop.f32.mrf.mxu0
        %v1503 = vpop.f32.mrf.mxu0
        %v1504 = vadd.f32 0.0, %v1503
        %v1505 = vpop.f32.mrf.mxu0
        %1506 = vmatprep.mubr.bf16.mxu0 0
        %1507 = vmatmul.mubr.bf16.gmra.mxu0 %v1389
        %v1508 = vpop.f32.mrf.mxu0
        %v1509 = vadd.f32 0.0, %v1508
        %v1510 = vpop.f32.mrf.mxu0
        %v1511 = vpop.f32.mrf.mxu0
        %v1512 = vadd.f32 0.0, %v1511
        %v1513 = vpop.f32.mrf.mxu0
        %1514 = vmatprep.mubr.bf16.mxu0 0
        %1515 = vmatmul.mubr.bf16.gmra.mxu0 %v1390
        %v1516 = vpop.f32.mrf.mxu0
        %v1517 = vadd.f32 0.0, %v1516
        %v1518 = vpop.f32.mrf.mxu0
        %v1519 = vpop.f32.mrf.mxu0
        %v1520 = vadd.f32 0.0, %v1519
        %v1521 = vpop.f32.mrf.mxu0
        %1522 = vmatprep.mubr.bf16.mxu0 0
        %1523 = vmatmul.mubr.bf16.gmra.mxu0 %v1391
        %v1524 = vpop.f32.mrf.mxu0
        %v1525 = vadd.f32 0.0, %v1524
        %v1526 = vpop.f32.mrf.mxu0
        %v1527 = vpop.f32.mrf.mxu0
        %v1528 = vadd.f32 0.0, %v1527
        %v1529 = vpop.f32.mrf.mxu0
        %1530 = vmatprep.mubr.bf16.mxu0 0
        %1531 = vmatmul.mubr.bf16.gmra.mxu0 %v1392
        %v1532 = vpop.f32.mrf.mxu0
        %v1533 = vadd.f32 0.0, %v1532
        %v1534 = vpop.f32.mrf.mxu0
        %v1535 = vpop.f32.mrf.mxu0
        %v1536 = vadd.f32 0.0, %v1535
        %v1537 = vpop.f32.mrf.mxu0
        %1538 = vmatprep.mubr.bf16.mxu0 0
        %1539 = vmatmul.mubr.bf16.gmra.mxu0 %v1393
        %v1540 = vpop.f32.mrf.mxu0
        %v1541 = vadd.f32 0.0, %v1540
        %v1542 = vpop.f32.mrf.mxu0
        %v1543 = vpop.f32.mrf.mxu0
        %v1544 = vadd.f32 0.0, %v1543
        %v1545 = vpop.f32.mrf.mxu0
        %1546 = vdwg.mxu0
        %v1547 = vadd.f32 %v1001, %v1259
        %v1548 = vadd.f32 %v1002, %v1261
        %v1549 = vadd.f32 %v1003, %v1263
        %v1550 = vadd.f32 %v1004, %v1265
        %v1551 = vadd.f32 %v1005, %v1267
        %v1552 = vadd.f32 %v1006, %v1269
        %v1553 = vadd.f32 %v1007, %v1271
        %v1554 = vadd.f32 %v1008, %v1273
        %v1555 = vadd.f32 %v1009, %v1275
        %v1556 = vadd.f32 %v1010, %v1277
        %v1557 = vadd.f32 %v1011, %v1279
        %v1558 = vadd.f32 %v1012, %v1281
        %v1559 = vadd.f32 %v1013, %v1283
        %v1560 = vadd.f32 %v1014, %v1285
        %v1561 = vadd.f32 %v1015, %v1287
        %v1562 = vadd.f32 %v1016, %v1289
        %v1563 = vadd.f32 %v1017, %v1307
        %v1564 = vadd.f32 %v1018, %v1309
        %v1565 = vadd.f32 %v1019, %v1311
        %v1566 = vadd.f32 %v1020, %v1313
        %v1567 = vadd.f32 %v1021, %v1315
        %v1568 = vadd.f32 %v1022, %v1317
        %v1569 = vadd.f32 %v1023, %v1319
        %v1570 = vadd.f32 %v1024, %v1321
        %v1571 = vadd.f32 %v1025, %v1323
        %v1572 = vadd.f32 %v1026, %v1325
        %v1573 = vadd.f32 %v1027, %v1327
        %v1574 = vadd.f32 %v1028, %v1329
        %v1575 = vadd.f32 %v1029, %v1331
        %v1576 = vadd.f32 %v1030, %v1333
        %v1577 = vadd.f32 %v1031, %v1335
        %v1578 = vadd.f32 %v1032, %v1337
        %v1579 = vadd.f32 %v1164, %v1485
        %v1580 = vadd.f32 %v1167, %v1488
        %v1581 = vadd.f32 %v1172, %v1493
        %v1582 = vadd.f32 %v1175, %v1496
        %v1583 = vadd.f32 %v1180, %v1501
        %v1584 = vadd.f32 %v1183, %v1504
        %v1585 = vadd.f32 %v1188, %v1509
        %v1586 = vadd.f32 %v1191, %v1512
        %v1587 = vadd.f32 %v1196, %v1517
        %v1588 = vadd.f32 %v1199, %v1520
        %v1589 = vadd.f32 %v1204, %v1525
        %v1590 = vadd.f32 %v1207, %v1528
        %v1591 = vadd.f32 %v1212, %v1533
        %v1592 = vadd.f32 %v1215, %v1536
        %v1593 = vadd.f32 %v1220, %v1541
        %v1594 = vadd.f32 %v1223, %v1544
        %v1595 = vld [vmem:[%s495] sm:$0xf]
        %v1596 = vld [vmem:[%s495 + $0x4] sm:$0xf]
        %v1597 = vld [vmem:[%s495 + $0x8] sm:$0xf]
        %v1598 = vld [vmem:[%s495 + $0xc] sm:$0xf]
        %v1599 = vld [vmem:[%s495 + $0x10] sm:$0xf]
        %v1600 = vld [vmem:[%s495 + $0x14] sm:$0xf]
        %v1601 = vld [vmem:[%s495 + $0x18] sm:$0xf]
        %v1602 = vld [vmem:[%s495 + $0x1c] sm:$0xf]
        %v1603 = vld [vmem:[%s495 + $0x20] sm:$0xf]
        %v1604 = vld [vmem:[%s495 + $0x24] sm:$0xf]
        %v1605 = vld [vmem:[%s495 + $0x28] sm:$0xf]
        %v1606 = vld [vmem:[%s495 + $0x2c] sm:$0xf]
        %v1607 = vld [vmem:[%s495 + $0x30] sm:$0xf]
        %v1608 = vld [vmem:[%s495 + $0x34] sm:$0xf]
        %v1609 = vld [vmem:[%s495 + $0x38] sm:$0xf]
        %v1610 = vld [vmem:[%s495 + $0x3c] sm:$0xf]
        %v1611 = vunpack.c.l.bf16 %v1595
        %v1612 = vunpack.c.l.bf16 %v1596
        %v1613 = vunpack.c.l.bf16 %v1597
        %v1614 = vunpack.c.l.bf16 %v1598
        %v1615 = vunpack.c.l.bf16 %v1599
        %v1616 = vunpack.c.l.bf16 %v1600
        %v1617 = vunpack.c.l.bf16 %v1601
        %v1618 = vunpack.c.l.bf16 %v1602
        %v1619 = vunpack.c.l.bf16 %v1603
        %v1620 = vunpack.c.l.bf16 %v1604
        %v1621 = vunpack.c.l.bf16 %v1605
        %v1622 = vunpack.c.l.bf16 %v1606
        %v1623 = vunpack.c.l.bf16 %v1607
        %v1624 = vunpack.c.l.bf16 %v1608
        %v1625 = vunpack.c.l.bf16 %v1609
        %v1626 = vunpack.c.l.bf16 %v1610
        %1627 = vadd.xlane.f32.xlu0 %v1611
        %v1628 = vpop.xlane.xlu0 %1627
        %1629 = vadd.xlane.f32.xlu0 %v1612
        %v1630 = vpop.xlane.xlu0 %1629
        %1631 = vadd.xlane.f32.xlu0 %v1613
        %v1632 = vpop.xlane.xlu0 %1631
        %1633 = vadd.xlane.f32.xlu0 %v1614
        %v1634 = vpop.xlane.xlu0 %1633
        %1635 = vadd.xlane.f32.xlu0 %v1615
        %v1636 = vpop.xlane.xlu0 %1635
        %1637 = vadd.xlane.f32.xlu0 %v1616
        %v1638 = vpop.xlane.xlu0 %1637
        %1639 = vadd.xlane.f32.xlu0 %v1617
        %v1640 = vpop.xlane.xlu0 %1639
        %1641 = vadd.xlane.f32.xlu0 %v1618
        %v1642 = vpop.xlane.xlu0 %1641
        %1643 = vadd.xlane.f32.xlu0 %v1619
        %v1644 = vpop.xlane.xlu0 %1643
        %1645 = vadd.xlane.f32.xlu0 %v1620
        %v1646 = vpop.xlane.xlu0 %1645
        %1647 = vadd.xlane.f32.xlu0 %v1621
        %v1648 = vpop.xlane.xlu0 %1647
        %1649 = vadd.xlane.f32.xlu0 %v1622
        %v1650 = vpop.xlane.xlu0 %1649
        %1651 = vadd.xlane.f32.xlu0 %v1623
        %v1652 = vpop.xlane.xlu0 %1651
        %1653 = vadd.xlane.f32.xlu0 %v1624
        %v1654 = vpop.xlane.xlu0 %1653
        %1655 = vadd.xlane.f32.xlu0 %v1625
        %v1656 = vpop.xlane.xlu0 %1655
        %1657 = vadd.xlane.f32.xlu0 %v1626
        %v1658 = vpop.xlane.xlu0 %1657
        %v1659 = vmul.f32 %v1611, %v1611
        %v1660 = vmul.f32 %v1612, %v1612
        %v1661 = vmul.f32 %v1613, %v1613
        %v1662 = vmul.f32 %v1614, %v1614
        %v1663 = vmul.f32 %v1615, %v1615
        %v1664 = vmul.f32 %v1616, %v1616
        %v1665 = vmul.f32 %v1617, %v1617
        %v1666 = vmul.f32 %v1618, %v1618
        %v1667 = vmul.f32 %v1619, %v1619
        %v1668 = vmul.f32 %v1620, %v1620
        %v1669 = vmul.f32 %v1621, %v1621
        %v1670 = vmul.f32 %v1622, %v1622
        %v1671 = vmul.f32 %v1623, %v1623
        %v1672 = vmul.f32 %v1624, %v1624
        %v1673 = vmul.f32 %v1625, %v1625
        %v1674 = vmul.f32 %v1626, %v1626
        %1675 = vadd.xlane.f32.xlu0 %v1659
        %v1676 = vpop.xlane.xlu0 %1675
        %1677 = vadd.xlane.f32.xlu0 %v1660
        %v1678 = vpop.xlane.xlu0 %1677
        %1679 = vadd.xlane.f32.xlu0 %v1661
        %v1680 = vpop.xlane.xlu0 %1679
        %1681 = vadd.xlane.f32.xlu0 %v1662
        %v1682 = vpop.xlane.xlu0 %1681
        %1683 = vadd.xlane.f32.xlu0 %v1663
        %v1684 = vpop.xlane.xlu0 %1683
        %1685 = vadd.xlane.f32.xlu0 %v1664
        %v1686 = vpop.xlane.xlu0 %1685
        %1687 = vadd.xlane.f32.xlu0 %v1665
        %v1688 = vpop.xlane.xlu0 %1687
        %1689 = vadd.xlane.f32.xlu0 %v1666
        %v1690 = vpop.xlane.xlu0 %1689
        %1691 = vadd.xlane.f32.xlu0 %v1667
        %v1692 = vpop.xlane.xlu0 %1691
        %1693 = vadd.xlane.f32.xlu0 %v1668
        %v1694 = vpop.xlane.xlu0 %1693
        %1695 = vadd.xlane.f32.xlu0 %v1669
        %v1696 = vpop.xlane.xlu0 %1695
        %1697 = vadd.xlane.f32.xlu0 %v1670
        %v1698 = vpop.xlane.xlu0 %1697
        %1699 = vadd.xlane.f32.xlu0 %v1671
        %v1700 = vpop.xlane.xlu0 %1699
        %1701 = vadd.xlane.f32.xlu0 %v1672
        %v1702 = vpop.xlane.xlu0 %1701
        %1703 = vadd.xlane.f32.xlu0 %v1673
        %v1704 = vpop.xlane.xlu0 %1703
        %1705 = vadd.xlane.f32.xlu0 %v1674
        %v1706 = vpop.xlane.xlu0 %1705
        %v1707 = vld [vmem:[#allocation10 + $0xc0] sm:$0xf]
        %v1708 = vld [vmem:[#allocation10 + $0xc4] sm:$0xf]
        %v1709 = vld [vmem:[#allocation10 + $0xc8] sm:$0xf]
        %v1710 = vld [vmem:[#allocation10 + $0xcc] sm:$0xf]
        %v1711 = vld [vmem:[#allocation10 + $0xd0] sm:$0xf]
        %v1712 = vld [vmem:[#allocation10 + $0xd4] sm:$0xf]
        %v1713 = vld [vmem:[#allocation10 + $0xd8] sm:$0xf]
        %v1714 = vld [vmem:[#allocation10 + $0xdc] sm:$0xf]
        %v1715 = vld [vmem:[#allocation10 + $0xe0] sm:$0xf]
        %v1716 = vld [vmem:[#allocation10 + $0xe4] sm:$0xf]
        %v1717 = vld [vmem:[#allocation10 + $0xe8] sm:$0xf]
        %v1718 = vld [vmem:[#allocation10 + $0xec] sm:$0xf]
        %v1719 = vld [vmem:[#allocation10 + $0xf0] sm:$0xf]
        %v1720 = vld [vmem:[#allocation10 + $0xf4] sm:$0xf]
        %v1721 = vld [vmem:[#allocation10 + $0xf8] sm:$0xf]
        %v1722 = vld [vmem:[#allocation10 + $0xfc] sm:$0xf]
        %v1739 = vunpack.c.l.b16 %v1595
        %v1740 = vunpack.c.l.b16 %v1596
        %v1741 = vunpack.c.l.b16 %v1597
        %v1742 = vunpack.c.l.b16 %v1598
        %v1743 = vunpack.c.l.b16 %v1599
        %v1744 = vunpack.c.l.b16 %v1600
        %v1745 = vunpack.c.l.b16 %v1601
        %v1746 = vunpack.c.l.b16 %v1602
        %v1747 = vunpack.c.l.b16 %v1603
        %v1748 = vunpack.c.l.b16 %v1604
        %v1749 = vunpack.c.l.b16 %v1605
        %v1750 = vunpack.c.l.b16 %v1606
        %v1751 = vunpack.c.l.b16 %v1607
        %v1752 = vunpack.c.l.b16 %v1608
        %v1753 = vunpack.c.l.b16 %v1609
        %v1754 = vunpack.c.l.b16 %v1610
        %v1755 = vpack.c.b16 %v1740, %v1739
        %v1756 = vpack.c.b16 %v1742, %v1741
        %v1757 = vpack.c.b16 %v1744, %v1743
        %v1758 = vpack.c.b16 %v1746, %v1745
        %v1759 = vpack.c.b16 %v1748, %v1747
        %v1760 = vpack.c.b16 %v1750, %v1749
        %v1761 = vpack.c.b16 %v1752, %v1751
        %v1762 = vpack.c.b16 %v1754, %v1753
        %v1787 = vunpack.c.l.b16 %v1707
        %v1788 = vunpack.c.l.b16 %v1708
        %v1789 = vunpack.c.l.b16 %v1709
        %v1790 = vunpack.c.l.b16 %v1710
        %v1791 = vunpack.c.l.b16 %v1711
        %v1792 = vunpack.c.l.b16 %v1712
        %v1793 = vunpack.c.l.b16 %v1713
        %v1794 = vunpack.c.l.b16 %v1714
        %v1795 = vunpack.c.l.b16 %v1715
        %v1796 = vunpack.c.l.b16 %v1716
        %v1797 = vunpack.c.l.b16 %v1717
        %v1798 = vunpack.c.l.b16 %v1718
        %v1799 = vunpack.c.l.b16 %v1719
        %v1800 = vunpack.c.l.b16 %v1720
        %v1801 = vunpack.c.l.b16 %v1721
        %v1802 = vunpack.c.l.b16 %v1722
        %v1803 = vpack.c.b16 %v1788, %v1787
        %v1804 = vpack.c.b16 %v1790, %v1789
        %v1805 = vpack.c.b16 %v1792, %v1791
        %v1806 = vpack.c.b16 %v1794, %v1793
        %v1807 = vpack.c.b16 %v1796, %v1795
        %v1808 = vpack.c.b16 %v1798, %v1797
        %v1809 = vpack.c.b16 %v1800, %v1799
        %v1810 = vpack.c.b16 %v1802, %v1801
        %1819 = vmatprep.subr.bf16.mxu0 0
        %1820 = vmatpush1.bf16.msra.mxu0 %v1810
        %1821 = vmatprep.subr.bf16.mxu0 0
        %1822 = vmatpush1.bf16.msra.mxu0 %v1809
        %1823 = vmatprep.subr.bf16.mxu0 0
        %1824 = vmatpush1.bf16.msra.mxu0 %v1808
        %1825 = vmatprep.subr.bf16.mxu0 0
        %1826 = vmatpush1.bf16.msra.mxu0 %v1807
        %1827 = vmatprep.subr.bf16.mxu0 0
        %1828 = vmatpush1.bf16.msra.mxu0 %v1806
        %1829 = vmatprep.subr.bf16.mxu0 0
        %1830 = vmatpush1.bf16.msra.mxu0 %v1805
        %1831 = vmatprep.subr.bf16.mxu0 0
        %1832 = vmatpush1.bf16.msra.mxu0 %v1804
        %1833 = vmatprep.subr.bf16.mxu0 0
        %1834 = vmatpush1.bf16.msra.mxu0 %v1803
        %1835 = vmatprep.subr.bf16.mxu0 0
        %1836 = vmatpush2.bf16.msra.mxu0 0
        %1837 = vmatprep.subr.bf16.mxu0 0
        %1838 = vmatpush2.bf16.msra.mxu0 0
        %1839 = vmatprep.subr.bf16.mxu0 0
        %1840 = vmatpush2.bf16.msra.mxu0 0
        %1841 = vmatprep.subr.bf16.mxu0 0
        %1842 = vmatpush2.bf16.msra.mxu0 0
        %1843 = vmatprep.subr.bf16.mxu0 0
        %1844 = vmatpush2.bf16.msra.mxu0 0
        %1845 = vmatprep.subr.bf16.mxu0 0
        %1846 = vmatpush2.bf16.msra.mxu0 0
        %1847 = vmatprep.subr.bf16.mxu0 0
        %1848 = vmatpush2.bf16.msra.mxu0 0
        %1849 = vmatprep.subr.bf16.mxu0 0
        %1850 = vmatpush2.bf16.msra.mxu0 0
        %1851 = vmatprep.mubr.bf16.mxu0 0
        %1852 = vmatmul.mubr.bf16.gmra.mxu0 %v1755
        %v1853 = vpop.f32.mrf.mxu0
        %v1854 = vadd.f32 0.0, %v1853
        %v1855 = vpop.f32.mrf.mxu0
        %v1856 = vpop.f32.mrf.mxu0
        %v1857 = vadd.f32 0.0, %v1856
        %v1858 = vpop.f32.mrf.mxu0
        %1859 = vmatprep.mubr.bf16.mxu0 0
        %1860 = vmatmul.mubr.bf16.gmra.mxu0 %v1756
        %v1861 = vpop.f32.mrf.mxu0
        %v1862 = vadd.f32 0.0, %v1861
        %v1863 = vpop.f32.mrf.mxu0
        %v1864 = vpop.f32.mrf.mxu0
        %v1865 = vadd.f32 0.0, %v1864
        %v1866 = vpop.f32.mrf.mxu0
        %1867 = vmatprep.mubr.bf16.mxu0 0
        %1868 = vmatmul.mubr.bf16.gmra.mxu0 %v1757
        %v1869 = vpop.f32.mrf.mxu0
        %v1870 = vadd.f32 0.0, %v1869
        %v1871 = vpop.f32.mrf.mxu0
        %v1872 = vpop.f32.mrf.mxu0
        %v1873 = vadd.f32 0.0, %v1872
        %v1874 = vpop.f32.mrf.mxu0
        %1875 = vmatprep.mubr.bf16.mxu0 0
        %1876 = vmatmul.mubr.bf16.gmra.mxu0 %v1758
        %v1877 = vpop.f32.mrf.mxu0
        %v1878 = vadd.f32 0.0, %v1877
        %v1879 = vpop.f32.mrf.mxu0
        %v1880 = vpop.f32.mrf.mxu0
        %v1881 = vadd.f32 0.0, %v1880
        %v1882 = vpop.f32.mrf.mxu0
        %1883 = vmatprep.mubr.bf16.mxu0 0
        %1884 = vmatmul.mubr.bf16.gmra.mxu0 %v1759
        %v1885 = vpop.f32.mrf.mxu0
        %v1886 = vadd.f32 0.0, %v1885
        %v1887 = vpop.f32.mrf.mxu0
        %v1888 = vpop.f32.mrf.mxu0
        %v1889 = vadd.f32 0.0, %v1888
        %v1890 = vpop.f32.mrf.mxu0
        %1891 = vmatprep.mubr.bf16.mxu0 0
        %1892 = vmatmul.mubr.bf16.gmra.mxu0 %v1760
        %v1893 = vpop.f32.mrf.mxu0
        %v1894 = vadd.f32 0.0, %v1893
        %v1895 = vpop.f32.mrf.mxu0
        %v1896 = vpop.f32.mrf.mxu0
        %v1897 = vadd.f32 0.0, %v1896
        %v1898 = vpop.f32.mrf.mxu0
        %1899 = vmatprep.mubr.bf16.mxu0 0
        %1900 = vmatmul.mubr.bf16.gmra.mxu0 %v1761
        %v1901 = vpop.f32.mrf.mxu0
        %v1902 = vadd.f32 0.0, %v1901
        %v1903 = vpop.f32.mrf.mxu0
        %v1904 = vpop.f32.mrf.mxu0
        %v1905 = vadd.f32 0.0, %v1904
        %v1906 = vpop.f32.mrf.mxu0
        %1907 = vmatprep.mubr.bf16.mxu0 0
        %1908 = vmatmul.mubr.bf16.gmra.mxu0 %v1762
        %v1909 = vpop.f32.mrf.mxu0
        %v1910 = vadd.f32 0.0, %v1909
        %v1911 = vpop.f32.mrf.mxu0
        %v1912 = vpop.f32.mrf.mxu0
        %v1913 = vadd.f32 0.0, %v1912
        %v1914 = vpop.f32.mrf.mxu0
        %1915 = vdwg.mxu0
        %v1916 = vadd.f32 %v1547, %v1628
        %v1917 = vadd.f32 %v1548, %v1630
        %v1918 = vadd.f32 %v1549, %v1632
        %v1919 = vadd.f32 %v1550, %v1634
        %v1920 = vadd.f32 %v1551, %v1636
        %v1921 = vadd.f32 %v1552, %v1638
        %v1922 = vadd.f32 %v1553, %v1640
        %v1923 = vadd.f32 %v1554, %v1642
        %v1924 = vadd.f32 %v1555, %v1644
        %v1925 = vadd.f32 %v1556, %v1646
        %v1926 = vadd.f32 %v1557, %v1648
        %v1927 = vadd.f32 %v1558, %v1650
        %v1928 = vadd.f32 %v1559, %v1652
        %v1929 = vadd.f32 %v1560, %v1654
        %v1930 = vadd.f32 %v1561, %v1656
        %v1931 = vadd.f32 %v1562, %v1658
        %v1932 = vadd.f32 %v1563, %v1676
        %v1933 = vadd.f32 %v1564, %v1678
        %v1934 = vadd.f32 %v1565, %v1680
        %v1935 = vadd.f32 %v1566, %v1682
        %v1936 = vadd.f32 %v1567, %v1684
        %v1937 = vadd.f32 %v1568, %v1686
        %v1938 = vadd.f32 %v1569, %v1688
        %v1939 = vadd.f32 %v1570, %v1690
        %v1940 = vadd.f32 %v1571, %v1692
        %v1941 = vadd.f32 %v1572, %v1694
        %v1942 = vadd.f32 %v1573, %v1696
        %v1943 = vadd.f32 %v1574, %v1698
        %v1944 = vadd.f32 %v1575, %v1700
        %v1945 = vadd.f32 %v1576, %v1702
        %v1946 = vadd.f32 %v1577, %v1704
        %v1947 = vadd.f32 %v1578, %v1706
        %v1948 = vadd.f32 %v1579, %v1854
        %v1949 = vadd.f32 %v1580, %v1857
        %v1950 = vadd.f32 %v1581, %v1862
        %v1951 = vadd.f32 %v1582, %v1865
        %v1952 = vadd.f32 %v1583, %v1870
        %v1953 = vadd.f32 %v1584, %v1873
        %v1954 = vadd.f32 %v1585, %v1878
        %v1955 = vadd.f32 %v1586, %v1881
        %v1956 = vadd.f32 %v1587, %v1886
        %v1957 = vadd.f32 %v1588, %v1889
        %v1958 = vadd.f32 %v1589, %v1894
        %v1959 = vadd.f32 %v1590, %v1897
        %v1960 = vadd.f32 %v1591, %v1902
        %v1961 = vadd.f32 %v1592, %v1905
        %v1962 = vadd.f32 %v1593, %v1910
        %v1963 = vadd.f32 %v1594, %v1913
        %v1964 = vmul.f32 %v1916, 0.001953125
        %v1965 = vmul.f32 %v1917, 0.001953125
        %v1966 = vmul.f32 %v1918, 0.001953125
        %v1967 = vmul.f32 %v1919, 0.001953125
        %v1968 = vmul.f32 %v1920, 0.001953125
        %v1969 = vmul.f32 %v1921, 0.001953125
        %v1970 = vmul.f32 %v1922, 0.001953125
        %v1971 = vmul.f32 %v1923, 0.001953125
        %v1972 = vmul.f32 %v1924, 0.001953125
        %v1973 = vmul.f32 %v1925, 0.001953125
        %v1974 = vmul.f32 %v1926, 0.001953125
        %v1975 = vmul.f32 %v1927, 0.001953125
        %v1976 = vmul.f32 %v1928, 0.001953125
        %v1977 = vmul.f32 %v1929, 0.001953125
        %v1978 = vmul.f32 %v1930, 0.001953125
        %v1979 = vmul.f32 %v1931, 0.001953125
        %v1980 = vmul.f32 %v1932, 0.001953125
        %v1981 = vmul.f32 %v1933, 0.001953125
        %v1982 = vmul.f32 %v1934, 0.001953125
        %v1983 = vmul.f32 %v1935, 0.001953125
        %v1984 = vmul.f32 %v1936, 0.001953125
        %v1985 = vmul.f32 %v1937, 0.001953125
        %v1986 = vmul.f32 %v1938, 0.001953125
        %v1987 = vmul.f32 %v1939, 0.001953125
        %v1988 = vmul.f32 %v1940, 0.001953125
        %v1989 = vmul.f32 %v1941, 0.001953125
        %v1990 = vmul.f32 %v1942, 0.001953125
        %v1991 = vmul.f32 %v1943, 0.001953125
        %v1992 = vmul.f32 %v1944, 0.001953125
        %v1993 = vmul.f32 %v1945, 0.001953125
        %v1994 = vmul.f32 %v1946, 0.001953125
        %v1995 = vmul.f32 %v1947, 0.001953125
        %v1996 = vmul.f32 %v1964, %v1964
        %v1997 = vmul.f32 %v1965, %v1965
        %v1998 = vmul.f32 %v1966, %v1966
        %v1999 = vmul.f32 %v1967, %v1967
        %v2000 = vmul.f32 %v1968, %v1968
        %v2001 = vmul.f32 %v1969, %v1969
        %v2002 = vmul.f32 %v1970, %v1970
        %v2003 = vmul.f32 %v1971, %v1971
        %v2004 = vmul.f32 %v1972, %v1972
        %v2005 = vmul.f32 %v1973, %v1973
        %v2006 = vmul.f32 %v1974, %v1974
        %v2007 = vmul.f32 %v1975, %v1975
        %v2008 = vmul.f32 %v1976, %v1976
        %v2009 = vmul.f32 %v1977, %v1977
        %v2010 = vmul.f32 %v1978, %v1978
        %v2011 = vmul.f32 %v1979, %v1979
        %v2012 = vsub.f32 %v1980, %v1996
        %v2013 = vsub.f32 %v1981, %v1997
        %v2014 = vsub.f32 %v1982, %v1998
        %v2015 = vsub.f32 %v1983, %v1999
        %v2016 = vsub.f32 %v1984, %v2000
        %v2017 = vsub.f32 %v1985, %v2001
        %v2018 = vsub.f32 %v1986, %v2002
        %v2019 = vsub.f32 %v1987, %v2003
        %v2020 = vsub.f32 %v1988, %v2004
        %v2021 = vsub.f32 %v1989, %v2005
        %v2022 = vsub.f32 %v1990, %v2006
        %v2023 = vsub.f32 %v1991, %v2007
        %v2024 = vsub.f32 %v1992, %v2008
        %v2025 = vsub.f32 %v1993, %v2009
        %v2026 = vsub.f32 %v1994, %v2010
        %v2027 = vsub.f32 %v1995, %v2011
        %v2028 = vmax.f32 %v2012, 0.0
        %v2029 = vmax.f32 %v2013, 0.0
        %v2030 = vmax.f32 %v2014, 0.0
        %v2031 = vmax.f32 %v2015, 0.0
        %v2032 = vmax.f32 %v2016, 0.0
        %v2033 = vmax.f32 %v2017, 0.0
        %v2034 = vmax.f32 %v2018, 0.0
        %v2035 = vmax.f32 %v2019, 0.0
        %v2036 = vmax.f32 %v2020, 0.0
        %v2037 = vmax.f32 %v2021, 0.0
        %v2038 = vmax.f32 %v2022, 0.0
        %v2039 = vmax.f32 %v2023, 0.0
        %v2040 = vmax.f32 %v2024, 0.0
        %v2041 = vmax.f32 %v2025, 0.0
        %v2042 = vmax.f32 %v2026, 0.0
        %v2043 = vmax.f32 %v2027, 0.0
        %v2044 = vadd.f32 %v2028, 1e-05
        %v2045 = vadd.f32 %v2029, 1e-05
        %v2046 = vadd.f32 %v2030, 1e-05
        %v2047 = vadd.f32 %v2031, 1e-05
        %v2048 = vadd.f32 %v2032, 1e-05
        %v2049 = vadd.f32 %v2033, 1e-05
        %v2050 = vadd.f32 %v2034, 1e-05
        %v2051 = vadd.f32 %v2035, 1e-05
        %v2052 = vadd.f32 %v2036, 1e-05
        %v2053 = vadd.f32 %v2037, 1e-05
        %v2054 = vadd.f32 %v2038, 1e-05
        %v2055 = vadd.f32 %v2039, 1e-05
        %v2056 = vadd.f32 %v2040, 1e-05
        %v2057 = vadd.f32 %v2041, 1e-05
        %v2058 = vadd.f32 %v2042, 1e-05
        %v2059 = vadd.f32 %v2043, 1e-05
        %v2060 = vrsqrt.pop %v2044
        %v2061 = vrsqrt.pop %v2045
        %v2062 = vrsqrt.pop %v2046
        %v2063 = vrsqrt.pop %v2047
        %v2064 = vrsqrt.pop %v2048
        %v2065 = vrsqrt.pop %v2049
        %v2066 = vrsqrt.pop %v2050
        %v2067 = vrsqrt.pop %v2051
        %v2068 = vrsqrt.pop %v2052
        %v2069 = vrsqrt.pop %v2053
        %v2070 = vrsqrt.pop %v2054
        %v2071 = vrsqrt.pop %v2055
        %v2072 = vrsqrt.pop %v2056
        %v2073 = vrsqrt.pop %v2057
        %v2074 = vrsqrt.pop %v2058
        %v2075 = vrsqrt.pop %v2059
        %v2076 = vld [vmem:[%s5] sm:$0x1]
        %v2077 = vld [vmem:[%s5 + $0x1] sm:$0x1]
        %v2078 = vlaneseq
        %v2079 = vshrl.u32 %v2078, 7
        %v2080 = vsub.s32 0, %v2079
        %v2081 = vrot.slane %v2076, %v2080
        %v2082 = vmul.f32 %v1964, %v2081
        %v2083 = vmul.f32 %v1965, %v2081
        %v2084 = vmul.f32 %v1966, %v2081
        %v2085 = vmul.f32 %v1967, %v2081
        %v2086 = vmul.f32 %v1968, %v2081
        %v2087 = vmul.f32 %v1969, %v2081
        %v2088 = vmul.f32 %v1970, %v2081
        %v2089 = vmul.f32 %v1971, %v2081
        %v2090 = vmul.f32 %v1972, %v2081
        %v2091 = vmul.f32 %v1973, %v2081
        %v2092 = vmul.f32 %v1974, %v2081
        %v2093 = vmul.f32 %v1975, %v2081
        %v2094 = vmul.f32 %v1976, %v2081
        %v2095 = vmul.f32 %v1977, %v2081
        %v2096 = vmul.f32 %v1978, %v2081
        %v2097 = vmul.f32 %v1979, %v2081
        %v2098 = vsub.f32 %v1948, %v2082
        %v2099 = vsub.f32 %v1949, %v2083
        %v2100 = vsub.f32 %v1950, %v2084
        %v2101 = vsub.f32 %v1951, %v2085
        %v2102 = vsub.f32 %v1952, %v2086
        %v2103 = vsub.f32 %v1953, %v2087
        %v2104 = vsub.f32 %v1954, %v2088
        %v2105 = vsub.f32 %v1955, %v2089
        %v2106 = vsub.f32 %v1956, %v2090
        %v2107 = vsub.f32 %v1957, %v2091
        %v2108 = vsub.f32 %v1958, %v2092
        %v2109 = vsub.f32 %v1959, %v2093
        %v2110 = vsub.f32 %v1960, %v2094
        %v2111 = vsub.f32 %v1961, %v2095
        %v2112 = vsub.f32 %v1962, %v2096
        %v2113 = vsub.f32 %v1963, %v2097
        %v2114 = vmul.f32 %v2098, %v2060
        %v2115 = vmul.f32 %v2099, %v2061
        %v2116 = vmul.f32 %v2100, %v2062
        %v2117 = vmul.f32 %v2101, %v2063
        %v2118 = vmul.f32 %v2102, %v2064
        %v2119 = vmul.f32 %v2103, %v2065
        %v2120 = vmul.f32 %v2104, %v2066
        %v2121 = vmul.f32 %v2105, %v2067
        %v2122 = vmul.f32 %v2106, %v2068
        %v2123 = vmul.f32 %v2107, %v2069
        %v2124 = vmul.f32 %v2108, %v2070
        %v2125 = vmul.f32 %v2109, %v2071
        %v2126 = vmul.f32 %v2110, %v2072
        %v2127 = vmul.f32 %v2111, %v2073
        %v2128 = vmul.f32 %v2112, %v2074
        %v2129 = vmul.f32 %v2113, %v2075
        %v2130 = vlaneseq
        %v2131 = vshrl.u32 %v2130, 7
        %v2132 = vsub.s32 0, %v2131
        %v2133 = vrot.slane %v2077, %v2132
        %v2134 = vadd.f32 %v2114, %v2133
        %v2135 = vadd.f32 %v2115, %v2133
        %v2136 = vadd.f32 %v2116, %v2133
        %v2137 = vadd.f32 %v2117, %v2133
        %v2138 = vadd.f32 %v2118, %v2133
        %v2139 = vadd.f32 %v2119, %v2133
        %v2140 = vadd.f32 %v2120, %v2133
        %v2141 = vadd.f32 %v2121, %v2133
        %v2142 = vadd.f32 %v2122, %v2133
        %v2143 = vadd.f32 %v2123, %v2133
        %v2144 = vadd.f32 %v2124, %v2133
        %v2145 = vadd.f32 %v2125, %v2133
        %v2146 = vadd.f32 %v2126, %v2133
        %v2147 = vadd.f32 %v2127, %v2133
        %v2148 = vadd.f32 %v2128, %v2133
        %v2149 = vadd.f32 %v2129, %v2133
        %v2150 = vpack.c.bf16 %v2135, %v2134
        %v2151 = vpack.c.bf16 %v2137, %v2136
        %v2152 = vpack.c.bf16 %v2139, %v2138
        %v2153 = vpack.c.bf16 %v2141, %v2140
        %v2154 = vpack.c.bf16 %v2143, %v2142
        %v2155 = vpack.c.bf16 %v2145, %v2144
        %v2156 = vpack.c.bf16 %v2147, %v2146
        %v2157 = vpack.c.bf16 %v2149, %v2148
        %v2166 = vunpack.c.l.b16 %v2150
        %v2167 = vunpack.c.h.b16 %v2150
        %v2168 = vunpack.c.l.b16 %v2151
        %v2169 = vunpack.c.h.b16 %v2151
        %v2170 = vunpack.c.l.b16 %v2152
        %v2171 = vunpack.c.h.b16 %v2152
        %v2172 = vunpack.c.l.b16 %v2153
        %v2173 = vunpack.c.h.b16 %v2153
        %v2174 = vunpack.c.l.b16 %v2154
        %v2175 = vunpack.c.h.b16 %v2154
        %v2176 = vunpack.c.l.b16 %v2155
        %v2177 = vunpack.c.h.b16 %v2155
        %v2178 = vunpack.c.l.b16 %v2156
        %v2179 = vunpack.c.h.b16 %v2156
        %v2180 = vunpack.c.l.b16 %v2157
        %v2181 = vunpack.c.h.b16 %v2157
        %v2182 = vpack.c.b16 %v2166, %v2166
        %v2183 = vpack.c.b16 %v2167, %v2167
        %v2184 = vpack.c.b16 %v2168, %v2168
        %v2185 = vpack.c.b16 %v2169, %v2169
        %v2186 = vpack.c.b16 %v2170, %v2170
        %v2187 = vpack.c.b16 %v2171, %v2171
        %v2188 = vpack.c.b16 %v2172, %v2172
        %v2189 = vpack.c.b16 %v2173, %v2173
        %v2190 = vpack.c.b16 %v2174, %v2174
        %v2191 = vpack.c.b16 %v2175, %v2175
        %v2192 = vpack.c.b16 %v2176, %v2176
        %v2193 = vpack.c.b16 %v2177, %v2177
        %v2194 = vpack.c.b16 %v2178, %v2178
        %v2195 = vpack.c.b16 %v2179, %v2179
        %v2196 = vpack.c.b16 %v2180, %v2180
        %v2197 = vpack.c.b16 %v2181, %v2181
        %2214 = vst [vmem:[%s542] sm:$0xf] %v2182
        %2215 = vst [vmem:[%s542 + $0x4] sm:$0xf] %v2183
        %2216 = vst [vmem:[%s542 + $0x8] sm:$0xf] %v2184
        %2217 = vst [vmem:[%s542 + $0xc] sm:$0xf] %v2185
        %2218 = vst [vmem:[%s542 + $0x10] sm:$0xf] %v2186
        %2219 = vst [vmem:[%s542 + $0x14] sm:$0xf] %v2187
        %2220 = vst [vmem:[%s542 + $0x18] sm:$0xf] %v2188
        %2221 = vst [vmem:[%s542 + $0x1c] sm:$0xf] %v2189
        %2222 = vst [vmem:[%s542 + $0x20] sm:$0xf] %v2190
        %2223 = vst [vmem:[%s542 + $0x24] sm:$0xf] %v2191
        %2224 = vst [vmem:[%s542 + $0x28] sm:$0xf] %v2192
        %2225 = vst [vmem:[%s542 + $0x2c] sm:$0xf] %v2193
        %2226 = vst [vmem:[%s542 + $0x30] sm:$0xf] %v2194
        %2227 = vst [vmem:[%s542 + $0x34] sm:$0xf] %v2195
        %2228 = vst [vmem:[%s542 + $0x38] sm:$0xf] %v2196
        %2229 = vst [vmem:[%s542 + $0x3c] sm:$0xf] %v2197
        %s2230 = sand.u32 %s205, 1
        %s2231 = scalar_lea.sflag [#allocation4], %s2230
        %s2232 = sand.u32 %s205, 1
        %s2233 = smul.addr %s2232, 64
        %s2234 = scalar_lea.vmem [#allocation11], %s2233
        // Predicated region
        $region65: #{tpu_custom_call.1} parent=43 // pred_check
          %p2235 = pneg %p215
        $region66: #{tpu_custom_call.1} parent=43 // pred_check_branch
          %2237 = sbr.rel (%p2235) target = $region68
        $region67: #{tpu_custom_call.1} parent=43 // pred_region
          %s2239 = ssub.s32 1024, 1024
          %2240 = vsyncadd %s2231, %s2239
          %s2241 = smul.addr %s34, 16
          %s2242 = smul.addr %s33, 16
          %s2243 = sadd.s32 %s2241, %s2242
          %s2244 = smul.addr %s2243, 64
          %s2245 = scalar_lea.hbm %s6, %s2244
          %s2246 = sshll.u32 %s2234, 4
          %s2247 = int_to_ptr.vmem [resolvable:$true] %s2246
          %2252 = dma.vmem_to_hbm [thread:$0]  %s2247, 1024, %s2245, %s2231, 64, 64, 4
        $region68: #{tpu_custom_call.1} parent=43 // pred_fallthru
          _
      $region44: #{tpu_custom_call.1} parent=5 // pred_fallthru
        _
      %p2253 = scmp.le.s32.totalorder 2, %s24
      // Predicated region
      $region69: #{tpu_custom_call.1} parent=5 // pred_check
        %p2254 = pneg %p2253
      $region70: #{tpu_custom_call.1} parent=5 // pred_check_branch
        %2256 = sbr.rel (%p2254) target = $region72
      $region71: #{tpu_custom_call.1} parent=5 // pred_region
        %s2257 = ssub.s32 %s24, 2
        // Predicated region
        $region73: #{tpu_custom_call.1} parent=71 // pred_check
          %p2258 = pneg %p221
        $region74: #{tpu_custom_call.1} parent=71 // pred_check_branch
          %2260 = sbr.rel (%p2258) target = $region76
        $region75: #{tpu_custom_call.1} parent=71 // pred_region
          %s2261 = sand.u32 %s206, 1
          %s2262 = scalar_lea.sflag [#allocation4], %s2261
          %s2263 = sand.u32 %s206, 1
          %s2264 = smul.addr %s2263, 64
          %s2265 = scalar_lea.vmem [#allocation11], %s2264
          %2266 = dma.done %s2262, 1024
        $region76: #{tpu_custom_call.1} parent=71 // pred_fallthru
          _
      $region72: #{tpu_custom_call.1} parent=5 // pred_fallthru
        _
    $region6: #{tpu_custom_call.1} parent=1 // loop_footer
      %s28 = sadd.s32 1, %s24
    $region7: #{tpu_custom_call.1} parent=1 // loop_footer_branch
      %23 = sbr.rel target = $region3
    $region8: #{tpu_custom_call.1} parent=1 // loop_exit
      _
    %2267 = vsyncpa [#allocation3], 1
    %s2268 = scalar_lea.sflag [#allocation3], 1
    %2269 = vsyncpa %s2268, 1
    %2270 = vsyncpa [#allocation6], 1
    %s2271 = scalar_lea.sflag [#allocation6], 1
    %2272 = vsyncpa %s2271, 1
    %2273 = vsyncpa [#allocation9], 1
    %s2274 = scalar_lea.sflag [#allocation9], 1
    %2275 = vsyncpa %s2274, 1
    %2276 = vsyncpa [#allocation4], 1
    %s2277 = scalar_lea.sflag [#allocation4], 1
    %2278 = vsyncpa %s2277, 1

</llo_original>
